<compile_context>
chip_gen: v5e
topology: v5e:2x2
jax: 0.10.0
libtpu: 0.0.40
codegen_flags: <defaults>
</compile_context>

<pallas_src>
import jax
import jax.numpy as jnp
from jax import lax
from jax.experimental import pallas as pl
from jax.experimental.pallas import tpu as pltpu
import numpy as np

# --- model hyper-parameters (small, consistent with the module) -------------
N_VOCAB = 128
N_EMBED = 32
N_HIDDEN = 32
N_LAYERS = 2
N_OUTPUT = 1
SEQ_LEN = 8
BATCH = 1          # the PyTorch forward hardcodes batch_size = 1

SLAB_ROWS = 104    # 3H (recurrent weights) + 4 (b0,b1,wfc,bfc), padded to x8


# --- Pallas kernel: fused gather + 2-layer LSTM + FC + sigmoid ---------------
def lstm_fc_kernel(ids_ref,        # SMEM (T,) int32 token ids
                   emb_proj_ref,   # VMEM (V, 1, 4H)  = embedding @ Wih0
                   slab_ref,       # VMEM (104, 4H) packed weights
                   out_ref):       # VMEM (8, 128) packed outputs
    T = ids_ref.shape[0]
    H = slab_ref.shape[1] // 4

    # ---- loop-invariant weight loads hoisted into vregs ----------------------
    whh0 = slab_ref[0 * H:1 * H, :]          # (H, 4H)
    wih1 = slab_ref[1 * H:2 * H, :]          # (H, 4H)
    whh1 = slab_ref[2 * H:3 * H, :]          # (H, 4H)
    b0 = slab_ref[3 * H + 0:3 * H + 1, :]    # (1, 4H)
    b1 = slab_ref[3 * H + 1:3 * H + 2, :]    # (1, 4H)

    def gates(g, c_prev):
        # 2 full-width EUP activations per cell instead of 4 per-gate ones.
        s = jax.nn.sigmoid(g)
        th = jnp.tanh(g)
        i = s[:, 0 * H:1 * H]
        f = s[:, 1 * H:2 * H]
        gg = th[:, 2 * H:3 * H]
        o = s[:, 3 * H:4 * H]
        c_new = f * c_prev + i * gg
        h_new = o * jnp.tanh(c_new)
        return h_new, c_new

    zero = jnp.zeros((1, H), jnp.float32)
    h0, c0, h1, c1 = zero, zero, zero, zero

    # ---- fully unrolled static time loop (T is a compile-time constant) -----
    for t in range(T):
        # layer-1 h-recurrence depends only on the PREVIOUS step's h1, so it is
        # off the layer-0 serial chain and can overlap layer-0's gate math.
        rec1 = jnp.dot(h1, whh1, preferred_element_type=jnp.float32)

        # layer 0: embedding gather + input projection is a single dynamic row
        # load (depends only on ids -> fully hoistable by the scheduler);
        # only the h-recurrence matmul remains on the serial chain.
        g0 = (emb_proj_ref[ids_ref[t]] + b0
              + jnp.dot(h0, whh0, preferred_element_type=jnp.float32))
        h0, c0 = gates(g0, c0)

        # TODO(synk): inter-layer LSTM dropout (p=0.8) treated as identity
        # (eval-mode semantics); train-mode dropout not implemented.
        g1 = jnp.dot(h0, wih1, preferred_element_type=jnp.float32) + rec1 + b1
        h1, c1 = gates(g1, c1)

    # ---- epilogue: fc + sigmoid on the last timestep -------------------------
    # (== sigmoid_out.view(1,-1)[:, -1] because N_OUTPUT == 1 and BATCH == 1)
    wfc_row = slab_ref[3 * H + 2:3 * H + 3, 0:H]     # (1, H)
    bfc = slab_ref[3 * H + 3:3 * H + 4, 0:1]         # (1, 1)
    z = jnp.sum(h1 * wfc_row, axis=1, keepdims=True) + bfc
    sig = jax.nn.sigmoid(z)                          # (1, 1)

    # ---- single lane-dense (8,128) output store ------------------------------
    state = jnp.concatenate([h0, h1, c0, c1], axis=0)                       # (4, H)
    state = jnp.concatenate(
        [state, jnp.zeros((4, 4 * H - H), jnp.float32)], axis=1)            # (4, 4H)
    sig_row = jnp.broadcast_to(sig, (1, 4 * H))                             # (1, 4H)
    out_ref[...] = jnp.concatenate(
        [sig_row, state, jnp.zeros((3, 4 * H), jnp.float32)], axis=0)       # (8, 4H)


def run_lstm_kernel(input_ids, params):
    vmem = pl.BlockSpec(memory_space=pltpu.MemorySpace.VMEM)
    smem = pl.BlockSpec(memory_space=pltpu.MemorySpace.SMEM)
    # Deliberately no grid / pipelining: the whole working set fits VMEM.
    return pl.pallas_call(
        lstm_fc_kernel,
        out_shape=jax.ShapeDtypeStruct((8, 128), jnp.float32),
        in_specs=[smem, vmem, vmem],
        out_specs=vmem,
    )(input_ids, params["emb_proj"], params["slab"])


# --- parameter construction (deterministic, PyTorch-like init) ---------------
def init_params(key):
    ks = jax.random.split(key, 11)
    bound = 1.0 / np.sqrt(N_HIDDEN)
    H = N_HIDDEN

    def unif(k, shape):
        return jax.random.uniform(k, shape, jnp.float32, -bound, bound)

    # PyTorch layout: weight_ih (4H, in), weight_hh (4H, H), gate order i,f,g,o.
    wih0 = unif(ks[0], (4 * H, N_EMBED))
    whh0 = unif(ks[1], (4 * H, H))
    bih0 = unif(ks[2], (4 * H,))
    bhh0 = unif(ks[3], (4 * H,))
    wih1 = unif(ks[4], (4 * H, H))
    whh1 = unif(ks[5], (4 * H, H))
    bih1 = unif(ks[6], (4 * H,))
    bhh1 = unif(ks[7], (4 * H,))
    wfc = unif(ks[8], (N_OUTPUT, H))
    bfc = unif(ks[9], (N_OUTPUT,))
    embedding = jax.random.normal(ks[10], (N_VOCAB, N_EMBED), jnp.float32)

    # Reference-friendly transposed layouts (x @ W everywhere).
    p = {
        "embedding": embedding,
        "wih0": wih0.T, "whh0": whh0.T, "b0": (bih0 + bhh0).reshape(1, -1),
        "wih1": wih1.T, "whh1": whh1.T, "b1": (bih1 + bhh1).reshape(1, -1),
        "wfc": wfc.T, "bfc": bfc.reshape(1, 1),
    }

    # --- kernel-packed params -------------------------------------------------
    # Fold the embedding table into the layer-0 input projection:
    # emb_proj[v] = embedding[v] @ Wih0^T, laid out as (V, 1, 4H) so the kernel
    # can gather rows with a dynamic index on the (untiled) leading axis.
    emb_proj = jnp.dot(embedding, wih0.T,
                       precision=lax.Precision.HIGHEST).reshape(N_VOCAB, 1, 4 * H)

    # One lane-aligned (104, 128) slab holding every other small weight.
    slab = jnp.zeros((SLAB_ROWS, 4 * H), jnp.float32)
    slab = slab.at[0 * H:1 * H, :].set(whh0.T)
    slab = slab.at[1 * H:2 * H, :].set(wih1.T)
    slab = slab.at[2 * H:3 * H, :].set(whh1.T)
    slab = slab.at[3 * H + 0, :].set(bih0 + bhh0)
    slab = slab.at[3 * H + 1, :].set(bih1 + bhh1)
    slab = slab.at[3 * H + 2, 0:H].set(wfc.reshape(-1))
    slab = slab.at[3 * H + 3, 0].set(bfc[0])

    p["emb_proj"] = emb_proj
    p["slab"] = slab
    return p


# --- full forward (everything fused into one Pallas kernel) ------------------
def sen_analy_lstm_forward(input_words, params):
    ids = input_words.reshape(-1).astype(jnp.int32)           # (T,), B == 1
    out = run_lstm_kernel(ids, params)                         # (8, 128)
    sigmoid_last = out[0:1, 0]                                 # (1,)
    hn = out[1:3, :N_HIDDEN].reshape(N_LAYERS, BATCH, N_HIDDEN)
    cn = out[3:5, :N_HIDDEN].reshape(N_LAYERS, BATCH, N_HIDDEN)
    return sigmoid_last, (hn, cn)


# --- pure-JAX reference for a correctness check -------------------------------
def reference_forward(input_words, params):
    emb = jnp.take(params["embedding"], input_words, axis=0).reshape(-1, N_EMBED)
    H = N_HIDDEN

    def cell(x_t, h, c, wih, whh, b):
        g = x_t @ wih + h @ whh + b
        i = jax.nn.sigmoid(g[:, :H]); f = jax.nn.sigmoid(g[:, H:2 * H])
        gg = jnp.tanh(g[:, 2 * H:3 * H]); o = jax.nn.sigmoid(g[:, 3 * H:])
        c = f * c + i * gg
        return o * jnp.tanh(c), c

    def scan_fn(carry, x_t):
        h0, c0, h1, c1 = carry
        h0, c0 = cell(x_t[None, :], h0, c0, params["wih0"], params["whh0"], params["b0"])
        h1, c1 = cell(h0, h1, c1, params["wih1"], params["whh1"], params["b1"])
        return (h0, c0, h1, c1), h1[0]

    zero = jnp.zeros((1, H), jnp.float32)
    (h0, c0, h1, c1), outs = lax.scan(scan_fn, (zero, zero, zero, zero), emb)
    z = outs @ params["wfc"] + params["bfc"]
    sig = jax.nn.sigmoid(z).reshape(BATCH, -1)[:, -1]
    hn = jnp.stack([h0[0], h1[0]]).reshape(N_LAYERS, BATCH, H)
    cn = jnp.stack([c0[0], c1[0]]).reshape(N_LAYERS, BATCH, H)
    return sig, (hn, cn)


if __name__ == "__main__":
    key = jax.random.PRNGKey(0)
    pkey, xkey = jax.random.split(key)
    params = init_params(pkey)

    input_words = jax.random.randint(xkey, (BATCH, SEQ_LEN), 0, N_VOCAB, jnp.int32)

    sigmoid_last, (h_n, c_n) = sen_analy_lstm_forward(input_words, params)
    jax.block_until_ready((sigmoid_last, h_n, c_n))

    ref_sig, (ref_h, ref_c) = reference_forward(input_words, params)
    # atol 2e-5: allows for fp32 reassociation from the host-side emb@Wih0 fold.
    assert np.allclose(np.asarray(sigmoid_last), np.asarray(ref_sig), atol=2e-5)
    assert np.allclose(np.asarray(h_n), np.asarray(ref_h), atol=2e-5)
    assert np.allclose(np.asarray(c_n), np.asarray(ref_c), atol=2e-5)

    print("KERNEL_OK")
</pallas_src>

<mosaic_0001>
module attributes {stable_mosaic.version = 11 : i64} {
  func.func @lstm_fc_kernel(%arg0: memref<8xi32, #tpu.memory_space<smem>>, %arg1: memref<128x1x128xf32, #tpu.memory_space<vmem>>, %arg2: memref<104x128xf32, #tpu.memory_space<vmem>>, %arg3: memref<8x128xf32, #tpu.memory_space<vmem>>) attributes {dimension_semantics = [], scalar_prefetch = 0 : i64, scratch_operands = 0 : i64, tpu.core_type = #tpu.core_type<tc>} {
    %c0 = arith.constant 0 : index
    %c0_0 = arith.constant 0 : index
    %0 = vector.load %arg2[%c0, %c0_0] : memref<104x128xf32, #tpu.memory_space<vmem>>, vector<32x128xf32>
    %c32 = arith.constant 32 : index
    %c0_1 = arith.constant 0 : index
    %1 = vector.load %arg2[%c32, %c0_1] : memref<104x128xf32, #tpu.memory_space<vmem>>, vector<32x128xf32>
    %c64 = arith.constant 64 : index
    %c0_2 = arith.constant 0 : index
    %2 = vector.load %arg2[%c64, %c0_2] : memref<104x128xf32, #tpu.memory_space<vmem>>, vector<32x128xf32>
    %c96 = arith.constant 96 : index
    %c0_3 = arith.constant 0 : index
    %3 = vector.load %arg2[%c96, %c0_3] : memref<104x128xf32, #tpu.memory_space<vmem>>, vector<1x128xf32>
    %c97 = arith.constant 97 : index
    %c0_4 = arith.constant 0 : index
    %4 = vector.load %arg2[%c97, %c0_4] : memref<104x128xf32, #tpu.memory_space<vmem>>, vector<1x128xf32>
    %cst = arith.constant 0.000000e+00 : f32
    %5 = vector.broadcast %cst : f32 to vector<1x32xf32>
    %cst_5 = arith.constant dense<0.000000e+00> : vector<1x128xf32>
    %6 = tpu.matmul %5, %2, %cst_5 {dimension_numbers = #tpu.dot_dimension_numbers<[1], [0], [0], [1], [0, 0, 1, 1], [], []>} : vector<1x32xf32>, vector<32x128xf32>, vector<1x128xf32> -> vector<1x128xf32>
    %c0_6 = arith.constant 0 : index
    %7 = memref.load %arg0[%c0_6] : memref<8xi32, #tpu.memory_space<smem>>
    %8 = arith.index_cast %7 : i32 to index
    %c0_7 = arith.constant 0 : index
    %c0_8 = arith.constant 0 : index
    %9 = vector.load %arg1[%8, %c0_7, %c0_8] : memref<128x1x128xf32, #tpu.memory_space<vmem>>, vector<1x1x128xf32>
    %10 = vector.shape_cast %9 : vector<1x1x128xf32> to vector<1x128xf32>
    %11 = arith.addf %10, %3 : vector<1x128xf32>
    %cst_9 = arith.constant dense<0.000000e+00> : vector<1x128xf32>
    %12 = tpu.matmul %5, %0, %cst_9 {dimension_numbers = #tpu.dot_dimension_numbers<[1], [0], [0], [1], [0, 0, 1, 1], [], []>} : vector<1x32xf32>, vector<32x128xf32>, vector<1x128xf32> -> vector<1x128xf32>
    %13 = arith.addf %11, %12 : vector<1x128xf32>
    %14 = arith.negf %13 : vector<1x128xf32>
    %15 = math.exp %14 : vector<1x128xf32>
    %cst_10 = arith.constant 1.000000e+00 : f32
    %16 = vector.broadcast %cst_10 : f32 to vector<1x128xf32>
    %17 = arith.addf %16, %15 : vector<1x128xf32>
    %18 = arith.divf %16, %17 : vector<1x128xf32>
    %19 = math.tanh %13 : vector<1x128xf32>
    %20 = vector.extract_strided_slice %18 {offsets = [0, 0], sizes = [1, 32], strides = [1, 1]} : vector<1x128xf32> to vector<1x32xf32>
    %21 = vector.extract_strided_slice %18 {offsets = [0, 32], sizes = [1, 32], strides = [1, 1]} : vector<1x128xf32> to vector<1x32xf32>
    %22 = vector.extract_strided_slice %19 {offsets = [0, 64], sizes = [1, 32], strides = [1, 1]} : vector<1x128xf32> to vector<1x32xf32>
    %23 = vector.extract_strided_slice %18 {offsets = [0, 96], sizes = [1, 32], strides = [1, 1]} : vector<1x128xf32> to vector<1x32xf32>
    %24 = arith.mulf %21, %5 : vector<1x32xf32>
    %25 = arith.mulf %20, %22 : vector<1x32xf32>
    %26 = arith.addf %24, %25 : vector<1x32xf32>
    %27 = math.tanh %26 : vector<1x32xf32>
    %28 = arith.mulf %23, %27 : vector<1x32xf32>
    %cst_11 = arith.constant dense<0.000000e+00> : vector<1x128xf32>
    %29 = tpu.matmul %28, %1, %cst_11 {dimension_numbers = #tpu.dot_dimension_numbers<[1], [0], [0], [1], [0, 0, 1, 1], [], []>} : vector<1x32xf32>, vector<32x128xf32>, vector<1x128xf32> -> vector<1x128xf32>
    %30 = arith.addf %29, %6 : vector<1x128xf32>
    %31 = arith.addf %30, %4 : vector<1x128xf32>
    %32 = arith.negf %31 : vector<1x128xf32>
    %33 = math.exp %32 : vector<1x128xf32>
    %cst_12 = arith.constant 1.000000e+00 : f32
    %34 = vector.broadcast %cst_12 : f32 to vector<1x128xf32>
    %35 = arith.addf %34, %33 : vector<1x128xf32>
    %36 = arith.divf %34, %35 : vector<1x128xf32>
    %37 = math.tanh %31 : vector<1x128xf32>
    %38 = vector.extract_strided_slice %36 {offsets = [0, 0], sizes = [1, 32], strides = [1, 1]} : vector<1x128xf32> to vector<1x32xf32>
    %39 = vector.extract_strided_slice %36 {offsets = [0, 32], sizes = [1, 32], strides = [1, 1]} : vector<1x128xf32> to vector<1x32xf32>
    %40 = vector.extract_strided_slice %37 {offsets = [0, 64], sizes = [1, 32], strides = [1, 1]} : vector<1x128xf32> to vector<1x32xf32>
    %41 = vector.extract_strided_slice %36 {offsets = [0, 96], sizes = [1, 32], strides = [1, 1]} : vector<1x128xf32> to vector<1x32xf32>
    %42 = arith.mulf %39, %5 : vector<1x32xf32>
    %43 = arith.mulf %38, %40 : vector<1x32xf32>
    %44 = arith.addf %42, %43 : vector<1x32xf32>
    %45 = math.tanh %44 : vector<1x32xf32>
    %46 = arith.mulf %41, %45 : vector<1x32xf32>
    %cst_13 = arith.constant dense<0.000000e+00> : vector<1x128xf32>
    %47 = tpu.matmul %46, %2, %cst_13 {dimension_numbers = #tpu.dot_dimension_numbers<[1], [0], [0], [1], [0, 0, 1, 1], [], []>} : vector<1x32xf32>, vector<32x128xf32>, vector<1x128xf32> -> vector<1x128xf32>
    %c1 = arith.constant 1 : index
    %48 = memref.load %arg0[%c1] : memref<8xi32, #tpu.memory_space<smem>>
    %49 = arith.index_cast %48 : i32 to index
    %c0_14 = arith.constant 0 : index
    %c0_15 = arith.constant 0 : index
    %50 = vector.load %arg1[%49, %c0_14, %c0_15] : memref<128x1x128xf32, #tpu.memory_space<vmem>>, vector<1x1x128xf32>
    %51 = vector.shape_cast %50 : vector<1x1x128xf32> to vector<1x128xf32>
    %52 = arith.addf %51, %3 : vector<1x128xf32>
    %cst_16 = arith.constant dense<0.000000e+00> : vector<1x128xf32>
    %53 = tpu.matmul %28, %0, %cst_16 {dimension_numbers = #tpu.dot_dimension_numbers<[1], [0], [0], [1], [0, 0, 1, 1], [], []>} : vector<1x32xf32>, vector<32x128xf32>, vector<1x128xf32> -> vector<1x128xf32>
    %54 = arith.addf %52, %53 : vector<1x128xf32>
    %55 = arith.negf %54 : vector<1x128xf32>
    %56 = math.exp %55 : vector<1x128xf32>
    %cst_17 = arith.constant 1.000000e+00 : f32
    %57 = vector.broadcast %cst_17 : f32 to vector<1x128xf32>
    %58 = arith.addf %57, %56 : vector<1x128xf32>
    %59 = arith.divf %57, %58 : vector<1x128xf32>
    %60 = math.tanh %54 : vector<1x128xf32>
    %61 = vector.extract_strided_slice %59 {offsets = [0, 0], sizes = [1, 32], strides = [1, 1]} : vector<1x128xf32> to vector<1x32xf32>
    %62 = vector.extract_strided_slice %59 {offsets = [0, 32], sizes = [1, 32], strides = [1, 1]} : vector<1x128xf32> to vector<1x32xf32>
    %63 = vector.extract_strided_slice %60 {offsets = [0, 64], sizes = [1, 32], strides = [1, 1]} : vector<1x128xf32> to vector<1x32xf32>
    %64 = vector.extract_strided_slice %59 {offsets = [0, 96], sizes = [1, 32], strides = [1, 1]} : vector<1x128xf32> to vector<1x32xf32>
    %65 = arith.mulf %62, %26 : vector<1x32xf32>
    %66 = arith.mulf %61, %63 : vector<1x32xf32>
    %67 = arith.addf %65, %66 : vector<1x32xf32>
    %68 = math.tanh %67 : vector<1x32xf32>
    %69 = arith.mulf %64, %68 : vector<1x32xf32>
    %cst_18 = arith.constant dense<0.000000e+00> : vector<1x128xf32>
    %70 = tpu.matmul %69, %1, %cst_18 {dimension_numbers = #tpu.dot_dimension_numbers<[1], [0], [0], [1], [0, 0, 1, 1], [], []>} : vector<1x32xf32>, vector<32x128xf32>, vector<1x128xf32> -> vector<1x128xf32>
    %71 = arith.addf %70, %47 : vector<1x128xf32>
    %72 = arith.addf %71, %4 : vector<1x128xf32>
    %73 = arith.negf %72 : vector<1x128xf32>
    %74 = math.exp %73 : vector<1x128xf32>
    %cst_19 = arith.constant 1.000000e+00 : f32
    %75 = vector.broadcast %cst_19 : f32 to vector<1x128xf32>
    %76 = arith.addf %75, %74 : vector<1x128xf32>
    %77 = arith.divf %75, %76 : vector<1x128xf32>
    %78 = math.tanh %72 : vector<1x128xf32>
    %79 = vector.extract_strided_slice %77 {offsets = [0, 0], sizes = [1, 32], strides = [1, 1]} : vector<1x128xf32> to vector<1x32xf32>
    %80 = vector.extract_strided_slice %77 {offsets = [0, 32], sizes = [1, 32], strides = [1, 1]} : vector<1x128xf32> to vector<1x32xf32>
    %81 = vector.extract_strided_slice %78 {offsets = [0, 64], sizes = [1, 32], strides = [1, 1]} : vector<1x128xf32> to vector<1x32xf32>
    %82 = vector.extract_strided_slice %77 {offsets = [0, 96], sizes = [1, 32], strides = [1, 1]} : vector<1x128xf32> to vector<1x32xf32>
    %83 = arith.mulf %80, %44 : vector<1x32xf32>
    %84 = arith.mulf %79, %81 : vector<1x32xf32>
    %85 = arith.addf %83, %84 : vector<1x32xf32>
    %86 = math.tanh %85 : vector<1x32xf32>
    %87 = arith.mulf %82, %86 : vector<1x32xf32>
    %cst_20 = arith.constant dense<0.000000e+00> : vector<1x128xf32>
    %88 = tpu.matmul %87, %2, %cst_20 {dimension_numbers = #tpu.dot_dimension_numbers<[1], [0], [0], [1], [0, 0, 1, 1], [], []>} : vector<1x32xf32>, vector<32x128xf32>, vector<1x128xf32> -> vector<1x128xf32>
    %c2 = arith.constant 2 : index
    %89 = memref.load %arg0[%c2] : memref<8xi32, #tpu.memory_space<smem>>
    %90 = arith.index_cast %89 : i32 to index
    %c0_21 = arith.constant 0 : index
    %c0_22 = arith.constant 0 : index
    %91 = vector.load %arg1[%90, %c0_21, %c0_22] : memref<128x1x128xf32, #tpu.memory_space<vmem>>, vector<1x1x128xf32>
    %92 = vector.shape_cast %91 : vector<1x1x128xf32> to vector<1x128xf32>
    %93 = arith.addf %92, %3 : vector<1x128xf32>
    %cst_23 = arith.constant dense<0.000000e+00> : vector<1x128xf32>
    %94 = tpu.matmul %69, %0, %cst_23 {dimension_numbers = #tpu.dot_dimension_numbers<[1], [0], [0], [1], [0, 0, 1, 1], [], []>} : vector<1x32xf32>, vector<32x128xf32>, vector<1x128xf32> -> vector<1x128xf32>
    %95 = arith.addf %93, %94 : vector<1x128xf32>
    %96 = arith.negf %95 : vector<1x128xf32>
    %97 = math.exp %96 : vector<1x128xf32>
    %cst_24 = arith.constant 1.000000e+00 : f32
    %98 = vector.broadcast %cst_24 : f32 to vector<1x128xf32>
    %99 = arith.addf %98, %97 : vector<1x128xf32>
    %100 = arith.divf %98, %99 : vector<1x128xf32>
    %101 = math.tanh %95 : vector<1x128xf32>
    %102 = vector.extract_strided_slice %100 {offsets = [0, 0], sizes = [1, 32], strides = [1, 1]} : vector<1x128xf32> to vector<1x32xf32>
    %103 = vector.extract_strided_slice %100 {offsets = [0, 32], sizes = [1, 32], strides = [1, 1]} : vector<1x128xf32> to vector<1x32xf32>
    %104 = vector.extract_strided_slice %101 {offsets = [0, 64], sizes = [1, 32], strides = [1, 1]} : vector<1x128xf32> to vector<1x32xf32>
    %105 = vector.extract_strided_slice %100 {offsets = [0, 96], sizes = [1, 32], strides = [1, 1]} : vector<1x128xf32> to vector<1x32xf32>
    %106 = arith.mulf %103, %67 : vector<1x32xf32>
    %107 = arith.mulf %102, %104 : vector<1x32xf32>
    %108 = arith.addf %106, %107 : vector<1x32xf32>
    %109 = math.tanh %108 : vector<1x32xf32>
    %110 = arith.mulf %105, %109 : vector<1x32xf32>
    %cst_25 = arith.constant dense<0.000000e+00> : vector<1x128xf32>
    %111 = tpu.matmul %110, %1, %cst_25 {dimension_numbers = #tpu.dot_dimension_numbers<[1], [0], [0], [1], [0, 0, 1, 1], [], []>} : vector<1x32xf32>, vector<32x128xf32>, vector<1x128xf32> -> vector<1x128xf32>
    %112 = arith.addf %111, %88 : vector<1x128xf32>
    %113 = arith.addf %112, %4 : vector<1x128xf32>
    %114 = arith.negf %113 : vector<1x128xf32>
    %115 = math.exp %114 : vector<1x128xf32>
    %cst_26 = arith.constant 1.000000e+00 : f32
    %116 = vector.broadcast %cst_26 : f32 to vector<1x128xf32>
    %117 = arith.addf %116, %115 : vector<1x128xf32>
    %118 = arith.divf %116, %117 : vector<1x128xf32>
    %119 = math.tanh %113 : vector<1x128xf32>
    %120 = vector.extract_strided_slice %118 {offsets = [0, 0], sizes = [1, 32], strides = [1, 1]} : vector<1x128xf32> to vector<1x32xf32>
    %121 = vector.extract_strided_slice %118 {offsets = [0, 32], sizes = [1, 32], strides = [1, 1]} : vector<1x128xf32> to vector<1x32xf32>
    %122 = vector.extract_strided_slice %119 {offsets = [0, 64], sizes = [1, 32], strides = [1, 1]} : vector<1x128xf32> to vector<1x32xf32>
    %123 = vector.extract_strided_slice %118 {offsets = [0, 96], sizes = [1, 32], strides = [1, 1]} : vector<1x128xf32> to vector<1x32xf32>
    %124 = arith.mulf %121, %85 : vector<1x32xf32>
    %125 = arith.mulf %120, %122 : vector<1x32xf32>
    %126 = arith.addf %124, %125 : vector<1x32xf32>
    %127 = math.tanh %126 : vector<1x32xf32>
    %128 = arith.mulf %123, %127 : vector<1x32xf32>
    %cst_27 = arith.constant dense<0.000000e+00> : vector<1x128xf32>
    %129 = tpu.matmul %128, %2, %cst_27 {dimension_numbers = #tpu.dot_dimension_numbers<[1], [0], [0], [1], [0, 0, 1, 1], [], []>} : vector<1x32xf32>, vector<32x128xf32>, vector<1x128xf32> -> vector<1x128xf32>
    %c3 = arith.constant 3 : index
    %130 = memref.load %arg0[%c3] : memref<8xi32, #tpu.memory_space<smem>>
    %131 = arith.index_cast %130 : i32 to index
    %c0_28 = arith.constant 0 : index
    %c0_29 = arith.constant 0 : index
    %132 = vector.load %arg1[%131, %c0_28, %c0_29] : memref<128x1x128xf32, #tpu.memory_space<vmem>>, vector<1x1x128xf32>
    %133 = vector.shape_cast %132 : vector<1x1x128xf32> to vector<1x128xf32>
    %134 = arith.addf %133, %3 : vector<1x128xf32>
    %cst_30 = arith.constant dense<0.000000e+00> : vector<1x128xf32>
    %135 = tpu.matmul %110, %0, %cst_30 {dimension_numbers = #tpu.dot_dimension_numbers<[1], [0], [0], [1], [0, 0, 1, 1], [], []>} : vector<1x32xf32>, vector<32x128xf32>, vector<1x128xf32> -> vector<1x128xf32>
    %136 = arith.addf %134, %135 : vector<1x128xf32>
    %137 = arith.negf %136 : vector<1x128xf32>
    %138 = math.exp %137 : vector<1x128xf32>
    %cst_31 = arith.constant 1.000000e+00 : f32
    %139 = vector.broadcast %cst_31 : f32 to vector<1x128xf32>
    %140 = arith.addf %139, %138 : vector<1x128xf32>
    %141 = arith.divf %139, %140 : vector<1x128xf32>
    %142 = math.tanh %136 : vector<1x128xf32>
    %143 = vector.extract_strided_slice %141 {offsets = [0, 0], sizes = [1, 32], strides = [1, 1]} : vector<1x128xf32> to vector<1x32xf32>
    %144 = vector.extract_strided_slice %141 {offsets = [0, 32], sizes = [1, 32], strides = [1, 1]} : vector<1x128xf32> to vector<1x32xf32>
    %145 = vector.extract_strided_slice %142 {offsets = [0, 64], sizes = [1, 32], strides = [1, 1]} : vector<1x128xf32> to vector<1x32xf32>
    %146 = vector.extract_strided_slice %141 {offsets = [0, 96], sizes = [1, 32], strides = [1, 1]} : vector<1x128xf32> to vector<1x32xf32>
    %147 = arith.mulf %144, %108 : vector<1x32xf32>
    %148 = arith.mulf %143, %145 : vector<1x32xf32>
    %149 = arith.addf %147, %148 : vector<1x32xf32>
    %150 = math.tanh %149 : vector<1x32xf32>
    %151 = arith.mulf %146, %150 : vector<1x32xf32>
    %cst_32 = arith.constant dense<0.000000e+00> : vector<1x128xf32>
    %152 = tpu.matmul %151, %1, %cst_32 {dimension_numbers = #tpu.dot_dimension_numbers<[1], [0], [0], [1], [0, 0, 1, 1], [], []>} : vector<1x32xf32>, vector<32x128xf32>, vector<1x128xf32> -> vector<1x128xf32>
    %153 = arith.addf %152, %129 : vector<1x128xf32>
    %154 = arith.addf %153, %4 : vector<1x128xf32>
    %155 = arith.negf %154 : vector<1x128xf32>
    %156 = math.exp %155 : vector<1x128xf32>
    %cst_33 = arith.constant 1.000000e+00 : f32
    %157 = vector.broadcast %cst_33 : f32 to vector<1x128xf32>
    %158 = arith.addf %157, %156 : vector<1x128xf32>
    %159 = arith.divf %157, %158 : vector<1x128xf32>
    %160 = math.tanh %154 : vector<1x128xf32>
    %161 = vector.extract_strided_slice %159 {offsets = [0, 0], sizes = [1, 32], strides = [1, 1]} : vector<1x128xf32> to vector<1x32xf32>
    %162 = vector.extract_strided_slice %159 {offsets = [0, 32], sizes = [1, 32], strides = [1, 1]} : vector<1x128xf32> to vector<1x32xf32>
    %163 = vector.extract_strided_slice %160 {offsets = [0, 64], sizes = [1, 32], strides = [1, 1]} : vector<1x128xf32> to vector<1x32xf32>
    %164 = vector.extract_strided_slice %159 {offsets = [0, 96], sizes = [1, 32], strides = [1, 1]} : vector<1x128xf32> to vector<1x32xf32>
    %165 = arith.mulf %162, %126 : vector<1x32xf32>
    %166 = arith.mulf %161, %163 : vector<1x32xf32>
    %167 = arith.addf %165, %166 : vector<1x32xf32>
    %168 = math.tanh %167 : vector<1x32xf32>
    %169 = arith.mulf %164, %168 : vector<1x32xf32>
    %cst_34 = arith.constant dense<0.000000e+00> : vector<1x128xf32>
    %170 = tpu.matmul %169, %2, %cst_34 {dimension_numbers = #tpu.dot_dimension_numbers<[1], [0], [0], [1], [0, 0, 1, 1], [], []>} : vector<1x32xf32>, vector<32x128xf32>, vector<1x128xf32> -> vector<1x128xf32>
    %c4 = arith.constant 4 : index
    %171 = memref.load %arg0[%c4] : memref<8xi32, #tpu.memory_space<smem>>
    %172 = arith.index_cast %171 : i32 to index
    %c0_35 = arith.constant 0 : index
    %c0_36 = arith.constant 0 : index
    %173 = vector.load %arg1[%172, %c0_35, %c0_36] : memref<128x1x128xf32, #tpu.memory_space<vmem>>, vector<1x1x128xf32>
    %174 = vector.shape_cast %173 : vector<1x1x128xf32> to vector<1x128xf32>
    %175 = arith.addf %174, %3 : vector<1x128xf32>
    %cst_37 = arith.constant dense<0.000000e+00> : vector<1x128xf32>
    %176 = tpu.matmul %151, %0, %cst_37 {dimension_numbers = #tpu.dot_dimension_numbers<[1], [0], [0], [1], [0, 0, 1, 1], [], []>} : vector<1x32xf32>, vector<32x128xf32>, vector<1x128xf32> -> vector<1x128xf32>
    %177 = arith.addf %175, %176 : vector<1x128xf32>
    %178 = arith.negf %177 : vector<1x128xf32>
    %179 = math.exp %178 : vector<1x128xf32>
    %cst_38 = arith.constant 1.000000e+00 : f32
    %180 = vector.broadcast %cst_38 : f32 to vector<1x128xf32>
    %181 = arith.addf %180, %179 : vector<1x128xf32>
    %182 = arith.divf %180, %181 : vector<1x128xf32>
    %183 = math.tanh %177 : vector<1x128xf32>
    %184 = vector.extract_strided_slice %182 {offsets = [0, 0], sizes = [1, 32], strides = [1, 1]} : vector<1x128xf32> to vector<1x32xf32>
    %185 = vector.extract_strided_slice %182 {offsets = [0, 32], sizes = [1, 32], strides = [1, 1]} : vector<1x128xf32> to vector<1x32xf32>
    %186 = vector.extract_strided_slice %183 {offsets = [0, 64], sizes = [1, 32], strides = [1, 1]} : vector<1x128xf32> to vector<1x32xf32>
    %187 = vector.extract_strided_slice %182 {offsets = [0, 96], sizes = [1, 32], strides = [1, 1]} : vector<1x128xf32> to vector<1x32xf32>
    %188 = arith.mulf %185, %149 : vector<1x32xf32>
    %189 = arith.mulf %184, %186 : vector<1x32xf32>
    %190 = arith.addf %188, %189 : vector<1x32xf32>
    %191 = math.tanh %190 : vector<1x32xf32>
    %192 = arith.mulf %187, %191 : vector<1x32xf32>
    %cst_39 = arith.constant dense<0.000000e+00> : vector<1x128xf32>
    %193 = tpu.matmul %192, %1, %cst_39 {dimension_numbers = #tpu.dot_dimension_numbers<[1], [0], [0], [1], [0, 0, 1, 1], [], []>} : vector<1x32xf32>, vector<32x128xf32>, vector<1x128xf32> -> vector<1x128xf32>
    %194 = arith.addf %193, %170 : vector<1x128xf32>
    %195 = arith.addf %194, %4 : vector<1x128xf32>
    %196 = arith.negf %195 : vector<1x128xf32>
    %197 = math.exp %196 : vector<1x128xf32>
    %cst_40 = arith.constant 1.000000e+00 : f32
    %198 = vector.broadcast %cst_40 : f32 to vector<1x128xf32>
    %199 = arith.addf %198, %197 : vector<1x128xf32>
    %200 = arith.divf %198, %199 : vector<1x128xf32>
    %201 = math.tanh %195 : vector<1x128xf32>
    %202 = vector.extract_strided_slice %200 {offsets = [0, 0], sizes = [1, 32], strides = [1, 1]} : vector<1x128xf32> to vector<1x32xf32>
    %203 = vector.extract_strided_slice %200 {offsets = [0, 32], sizes = [1, 32], strides = [1, 1]} : vector<1x128xf32> to vector<1x32xf32>
    %204 = vector.extract_strided_slice %201 {offsets = [0, 64], sizes = [1, 32], strides = [1, 1]} : vector<1x128xf32> to vector<1x32xf32>
    %205 = vector.extract_strided_slice %200 {offsets = [0, 96], sizes = [1, 32], strides = [1, 1]} : vector<1x128xf32> to vector<1x32xf32>
    %206 = arith.mulf %203, %167 : vector<1x32xf32>
    %207 = arith.mulf %202, %204 : vector<1x32xf32>
    %208 = arith.addf %206, %207 : vector<1x32xf32>
    %209 = math.tanh %208 : vector<1x32xf32>
    %210 = arith.mulf %205, %209 : vector<1x32xf32>
    %cst_41 = arith.constant dense<0.000000e+00> : vector<1x128xf32>
    %211 = tpu.matmul %210, %2, %cst_41 {dimension_numbers = #tpu.dot_dimension_numbers<[1], [0], [0], [1], [0, 0, 1, 1], [], []>} : vector<1x32xf32>, vector<32x128xf32>, vector<1x128xf32> -> vector<1x128xf32>
    %c5 = arith.constant 5 : index
    %212 = memref.load %arg0[%c5] : memref<8xi32, #tpu.memory_space<smem>>
    %213 = arith.index_cast %212 : i32 to index
    %c0_42 = arith.constant 0 : index
    %c0_43 = arith.constant 0 : index
    %214 = vector.load %arg1[%213, %c0_42, %c0_43] : memref<128x1x128xf32, #tpu.memory_space<vmem>>, vector<1x1x128xf32>
    %215 = vector.shape_cast %214 : vector<1x1x128xf32> to vector<1x128xf32>
    %216 = arith.addf %215, %3 : vector<1x128xf32>
    %cst_44 = arith.constant dense<0.000000e+00> : vector<1x128xf32>
    %217 = tpu.matmul %192, %0, %cst_44 {dimension_numbers = #tpu.dot_dimension_numbers<[1], [0], [0], [1], [0, 0, 1, 1], [], []>} : vector<1x32xf32>, vector<32x128xf32>, vector<1x128xf32> -> vector<1x128xf32>
    %218 = arith.addf %216, %217 : vector<1x128xf32>
    %219 = arith.negf %218 : vector<1x128xf32>
    %220 = math.exp %219 : vector<1x128xf32>
    %cst_45 = arith.constant 1.000000e+00 : f32
    %221 = vector.broadcast %cst_45 : f32 to vector<1x128xf32>
    %222 = arith.addf %221, %220 : vector<1x128xf32>
    %223 = arith.divf %221, %222 : vector<1x128xf32>
    %224 = math.tanh %218 : vector<1x128xf32>
    %225 = vector.extract_strided_slice %223 {offsets = [0, 0], sizes = [1, 32], strides = [1, 1]} : vector<1x128xf32> to vector<1x32xf32>
    %226 = vector.extract_strided_slice %223 {offsets = [0, 32], sizes = [1, 32], strides = [1, 1]} : vector<1x128xf32> to vector<1x32xf32>
    %227 = vector.extract_strided_slice %224 {offsets = [0, 64], sizes = [1, 32], strides = [1, 1]} : vector<1x128xf32> to vector<1x32xf32>
    %228 = vector.extract_strided_slice %223 {offsets = [0, 96], sizes = [1, 32], strides = [1, 1]} : vector<1x128xf32> to vector<1x32xf32>
    %229 = arith.mulf %226, %190 : vector<1x32xf32>
    %230 = arith.mulf %225, %227 : vector<1x32xf32>
    %231 = arith.addf %229, %230 : vector<1x32xf32>
    %232 = math.tanh %231 : vector<1x32xf32>
    %233 = arith.mulf %228, %232 : vector<1x32xf32>
    %cst_46 = arith.constant dense<0.000000e+00> : vector<1x128xf32>
    %234 = tpu.matmul %233, %1, %cst_46 {dimension_numbers = #tpu.dot_dimension_numbers<[1], [0], [0], [1], [0, 0, 1, 1], [], []>} : vector<1x32xf32>, vector<32x128xf32>, vector<1x128xf32> -> vector<1x128xf32>
    %235 = arith.addf %234, %211 : vector<1x128xf32>
    %236 = arith.addf %235, %4 : vector<1x128xf32>
    %237 = arith.negf %236 : vector<1x128xf32>
    %238 = math.exp %237 : vector<1x128xf32>
    %cst_47 = arith.constant 1.000000e+00 : f32
    %239 = vector.broadcast %cst_47 : f32 to vector<1x128xf32>
    %240 = arith.addf %239, %238 : vector<1x128xf32>
    %241 = arith.divf %239, %240 : vector<1x128xf32>
    %242 = math.tanh %236 : vector<1x128xf32>
    %243 = vector.extract_strided_slice %241 {offsets = [0, 0], sizes = [1, 32], strides = [1, 1]} : vector<1x128xf32> to vector<1x32xf32>
    %244 = vector.extract_strided_slice %241 {offsets = [0, 32], sizes = [1, 32], strides = [1, 1]} : vector<1x128xf32> to vector<1x32xf32>
    %245 = vector.extract_strided_slice %242 {offsets = [0, 64], sizes = [1, 32], strides = [1, 1]} : vector<1x128xf32> to vector<1x32xf32>
    %246 = vector.extract_strided_slice %241 {offsets = [0, 96], sizes = [1, 32], strides = [1, 1]} : vector<1x128xf32> to vector<1x32xf32>
    %247 = arith.mulf %244, %208 : vector<1x32xf32>
    %248 = arith.mulf %243, %245 : vector<1x32xf32>
    %249 = arith.addf %247, %248 : vector<1x32xf32>
    %250 = math.tanh %249 : vector<1x32xf32>
    %251 = arith.mulf %246, %250 : vector<1x32xf32>
    %cst_48 = arith.constant dense<0.000000e+00> : vector<1x128xf32>
    %252 = tpu.matmul %251, %2, %cst_48 {dimension_numbers = #tpu.dot_dimension_numbers<[1], [0], [0], [1], [0, 0, 1, 1], [], []>} : vector<1x32xf32>, vector<32x128xf32>, vector<1x128xf32> -> vector<1x128xf32>
    %c6 = arith.constant 6 : index
    %253 = memref.load %arg0[%c6] : memref<8xi32, #tpu.memory_space<smem>>
    %254 = arith.index_cast %253 : i32 to index
    %c0_49 = arith.constant 0 : index
    %c0_50 = arith.constant 0 : index
    %255 = vector.load %arg1[%254, %c0_49, %c0_50] : memref<128x1x128xf32, #tpu.memory_space<vmem>>, vector<1x1x128xf32>
    %256 = vector.shape_cast %255 : vector<1x1x128xf32> to vector<1x128xf32>
    %257 = arith.addf %256, %3 : vector<1x128xf32>
    %cst_51 = arith.constant dense<0.000000e+00> : vector<1x128xf32>
    %258 = tpu.matmul %233, %0, %cst_51 {dimension_numbers = #tpu.dot_dimension_numbers<[1], [0], [0], [1], [0, 0, 1, 1], [], []>} : vector<1x32xf32>, vector<32x128xf32>, vector<1x128xf32> -> vector<1x128xf32>
    %259 = arith.addf %257, %258 : vector<1x128xf32>
    %260 = arith.negf %259 : vector<1x128xf32>
    %261 = math.exp %260 : vector<1x128xf32>
    %cst_52 = arith.constant 1.000000e+00 : f32
    %262 = vector.broadcast %cst_52 : f32 to vector<1x128xf32>
    %263 = arith.addf %262, %261 : vector<1x128xf32>
    %264 = arith.divf %262, %263 : vector<1x128xf32>
    %265 = math.tanh %259 : vector<1x128xf32>
    %266 = vector.extract_strided_slice %264 {offsets = [0, 0], sizes = [1, 32], strides = [1, 1]} : vector<1x128xf32> to vector<1x32xf32>
    %267 = vector.extract_strided_slice %264 {offsets = [0, 32], sizes = [1, 32], strides = [1, 1]} : vector<1x128xf32> to vector<1x32xf32>
    %268 = vector.extract_strided_slice %265 {offsets = [0, 64], sizes = [1, 32], strides = [1, 1]} : vector<1x128xf32> to vector<1x32xf32>
    %269 = vector.extract_strided_slice %264 {offsets = [0, 96], sizes = [1, 32], strides = [1, 1]} : vector<1x128xf32> to vector<1x32xf32>
    %270 = arith.mulf %267, %231 : vector<1x32xf32>
    %271 = arith.mulf %266, %268 : vector<1x32xf32>
    %272 = arith.addf %270, %271 : vector<1x32xf32>
    %273 = math.tanh %272 : vector<1x32xf32>
    %274 = arith.mulf %269, %273 : vector<1x32xf32>
    %cst_53 = arith.constant dense<0.000000e+00> : vector<1x128xf32>
    %275 = tpu.matmul %274, %1, %cst_53 {dimension_numbers = #tpu.dot_dimension_numbers<[1], [0], [0], [1], [0, 0, 1, 1], [], []>} : vector<1x32xf32>, vector<32x128xf32>, vector<1x128xf32> -> vector<1x128xf32>
    %276 = arith.addf %275, %252 : vector<1x128xf32>
    %277 = arith.addf %276, %4 : vector<1x128xf32>
    %278 = arith.negf %277 : vector<1x128xf32>
    %279 = math.exp %278 : vector<1x128xf32>
    %cst_54 = arith.constant 1.000000e+00 : f32
    %280 = vector.broadcast %cst_54 : f32 to vector<1x128xf32>
    %281 = arith.addf %280, %279 : vector<1x128xf32>
    %282 = arith.divf %280, %281 : vector<1x128xf32>
    %283 = math.tanh %277 : vector<1x128xf32>
    %284 = vector.extract_strided_slice %282 {offsets = [0, 0], sizes = [1, 32], strides = [1, 1]} : vector<1x128xf32> to vector<1x32xf32>
    %285 = vector.extract_strided_slice %282 {offsets = [0, 32], sizes = [1, 32], strides = [1, 1]} : vector<1x128xf32> to vector<1x32xf32>
    %286 = vector.extract_strided_slice %283 {offsets = [0, 64], sizes = [1, 32], strides = [1, 1]} : vector<1x128xf32> to vector<1x32xf32>
    %287 = vector.extract_strided_slice %282 {offsets = [0, 96], sizes = [1, 32], strides = [1, 1]} : vector<1x128xf32> to vector<1x32xf32>
    %288 = arith.mulf %285, %249 : vector<1x32xf32>
    %289 = arith.mulf %284, %286 : vector<1x32xf32>
    %290 = arith.addf %288, %289 : vector<1x32xf32>
    %291 = math.tanh %290 : vector<1x32xf32>
    %292 = arith.mulf %287, %291 : vector<1x32xf32>
    %cst_55 = arith.constant dense<0.000000e+00> : vector<1x128xf32>
    %293 = tpu.matmul %292, %2, %cst_55 {dimension_numbers = #tpu.dot_dimension_numbers<[1], [0], [0], [1], [0, 0, 1, 1], [], []>} : vector<1x32xf32>, vector<32x128xf32>, vector<1x128xf32> -> vector<1x128xf32>
    %c7 = arith.constant 7 : index
    %294 = memref.load %arg0[%c7] : memref<8xi32, #tpu.memory_space<smem>>
    %295 = arith.index_cast %294 : i32 to index
    %c0_56 = arith.constant 0 : index
    %c0_57 = arith.constant 0 : index
    %296 = vector.load %arg1[%295, %c0_56, %c0_57] : memref<128x1x128xf32, #tpu.memory_space<vmem>>, vector<1x1x128xf32>
    %297 = vector.shape_cast %296 : vector<1x1x128xf32> to vector<1x128xf32>
    %298 = arith.addf %297, %3 : vector<1x128xf32>
    %cst_58 = arith.constant dense<0.000000e+00> : vector<1x128xf32>
    %299 = tpu.matmul %274, %0, %cst_58 {dimension_numbers = #tpu.dot_dimension_numbers<[1], [0], [0], [1], [0, 0, 1, 1], [], []>} : vector<1x32xf32>, vector<32x128xf32>, vector<1x128xf32> -> vector<1x128xf32>
    %300 = arith.addf %298, %299 : vector<1x128xf32>
    %301 = arith.negf %300 : vector<1x128xf32>
    %302 = math.exp %301 : vector<1x128xf32>
    %cst_59 = arith.constant 1.000000e+00 : f32
    %303 = vector.broadcast %cst_59 : f32 to vector<1x128xf32>
    %304 = arith.addf %303, %302 : vector<1x128xf32>
    %305 = arith.divf %303, %304 : vector<1x128xf32>
    %306 = math.tanh %300 : vector<1x128xf32>
    %307 = vector.extract_strided_slice %305 {offsets = [0, 0], sizes = [1, 32], strides = [1, 1]} : vector<1x128xf32> to vector<1x32xf32>
    %308 = vector.extract_strided_slice %305 {offsets = [0, 32], sizes = [1, 32], strides = [1, 1]} : vector<1x128xf32> to vector<1x32xf32>
    %309 = vector.extract_strided_slice %306 {offsets = [0, 64], sizes = [1, 32], strides = [1, 1]} : vector<1x128xf32> to vector<1x32xf32>
    %310 = vector.extract_strided_slice %305 {offsets = [0, 96], sizes = [1, 32], strides = [1, 1]} : vector<1x128xf32> to vector<1x32xf32>
    %311 = arith.mulf %308, %272 : vector<1x32xf32>
    %312 = arith.mulf %307, %309 : vector<1x32xf32>
    %313 = arith.addf %311, %312 : vector<1x32xf32>
    %314 = math.tanh %313 : vector<1x32xf32>
    %315 = arith.mulf %310, %314 : vector<1x32xf32>
    %cst_60 = arith.constant dense<0.000000e+00> : vector<1x128xf32>
    %316 = tpu.matmul %315, %1, %cst_60 {dimension_numbers = #tpu.dot_dimension_numbers<[1], [0], [0], [1], [0, 0, 1, 1], [], []>} : vector<1x32xf32>, vector<32x128xf32>, vector<1x128xf32> -> vector<1x128xf32>
    %317 = arith.addf %316, %293 : vector<1x128xf32>
    %318 = arith.addf %317, %4 : vector<1x128xf32>
    %319 = arith.negf %318 : vector<1x128xf32>
    %320 = math.exp %319 : vector<1x128xf32>
    %cst_61 = arith.constant 1.000000e+00 : f32
    %321 = vector.broadcast %cst_61 : f32 to vector<1x128xf32>
    %322 = arith.addf %321, %320 : vector<1x128xf32>
    %323 = arith.divf %321, %322 : vector<1x128xf32>
    %324 = math.tanh %318 : vector<1x128xf32>
    %325 = vector.extract_strided_slice %323 {offsets = [0, 0], sizes = [1, 32], strides = [1, 1]} : vector<1x128xf32> to vector<1x32xf32>
    %326 = vector.extract_strided_slice %323 {offsets = [0, 32], sizes = [1, 32], strides = [1, 1]} : vector<1x128xf32> to vector<1x32xf32>
    %327 = vector.extract_strided_slice %324 {offsets = [0, 64], sizes = [1, 32], strides = [1, 1]} : vector<1x128xf32> to vector<1x32xf32>
    %328 = vector.extract_strided_slice %323 {offsets = [0, 96], sizes = [1, 32], strides = [1, 1]} : vector<1x128xf32> to vector<1x32xf32>
    %329 = arith.mulf %326, %290 : vector<1x32xf32>
    %330 = arith.mulf %325, %327 : vector<1x32xf32>
    %331 = arith.addf %329, %330 : vector<1x32xf32>
    %332 = math.tanh %331 : vector<1x32xf32>
    %333 = arith.mulf %328, %332 : vector<1x32xf32>
    %c98 = arith.constant 98 : index
    %c0_62 = arith.constant 0 : index
    %334 = vector.load %arg2[%c98, %c0_62] : memref<104x128xf32, #tpu.memory_space<vmem>>, vector<1x32xf32>
    %c99 = arith.constant 99 : index
    %c0_63 = arith.constant 0 : index
    %335 = vector.load %arg2[%c99, %c0_63] : memref<104x128xf32, #tpu.memory_space<vmem>>, vector<1x1xf32>
    %336 = arith.mulf %333, %334 : vector<1x32xf32>
    %cst_64 = arith.constant dense<0.000000e+00> : vector<1xf32>
    %337 = vector.multi_reduction <add>, %336, %cst_64 [1] : vector<1x32xf32> to vector<1xf32>
    %338 = vector.shape_cast %337 : vector<1xf32> to vector<1x1xf32>
    %339 = arith.addf %338, %335 : vector<1x1xf32>
    %340 = arith.negf %339 : vector<1x1xf32>
    %341 = math.exp %340 : vector<1x1xf32>
    %cst_65 = arith.constant 1.000000e+00 : f32
    %342 = vector.broadcast %cst_65 : f32 to vector<1x1xf32>
    %343 = arith.addf %342, %341 : vector<1x1xf32>
    %344 = arith.divf %342, %343 : vector<1x1xf32>
    %345 = tpu.concatenate %315, %333, %313, %331 in 0 : vector<1x32xf32>, vector<1x32xf32>, vector<1x32xf32>, vector<1x32xf32> -> vector<4x32xf32>
    %cst_66 = arith.constant 0.000000e+00 : f32
    %346 = vector.broadcast %cst_66 : f32 to vector<4x96xf32>
    %347 = tpu.concatenate %345, %346 in 1 : vector<4x32xf32>, vector<4x96xf32> -> vector<4x128xf32>
    %348 = vector.shape_cast %344 : vector<1x1xf32> to vector<1x1xf32>
    %349 = vector.broadcast %348 : vector<1x1xf32> to vector<1x128xf32>
    %cst_67 = arith.constant 0.000000e+00 : f32
    %350 = vector.broadcast %cst_67 : f32 to vector<3x128xf32>
    %351 = tpu.concatenate %349, %347, %350 in 0 : vector<1x128xf32>, vector<4x128xf32>, vector<3x128xf32> -> vector<8x128xf32>
    %c0_68 = arith.constant 0 : index
    %c0_69 = arith.constant 0 : index
    %352 = vector.load %arg3[%c0_68, %c0_69] : memref<8x128xf32, #tpu.memory_space<vmem>>, vector<8x128xf32>
    tpu.vector_store %arg3[%c0_68, %c0_69], %351 {strides = array<i32>} : memref<8x128xf32, #tpu.memory_space<vmem>>, vector<8x128xf32>,
    return
  }
}

</mosaic_0001>

<llo_original>
// kernel: tpu_custom_call.1
$region0: #{tpu_custom_call.1}
  #allocation0 [shape = 'u32[]', space=smem, size = 0x4, offset = 0x4, fixed_abs, tag = 'smem constant byte address 0x4 - core index']
  #allocation1 [shape = 'u32[72,128]{1,0:T(1,128)}', space=vmem, size = 0x9000, scoped, tag = 'internal scratch']
  %s0 = inlined_call_operand.hbm [shape: s32[8], index: 0, kind: input, shape index: {}]
  %s1 = inlined_call_operand.hbm [shape: f32[128,1,128], index: 1, kind: input, shape index: {}]
  %s2 = inlined_call_operand.hbm [shape: f32[104,128], index: 2, kind: input, shape index: {}]
  %s3 = inlined_call_operand.hbm [shape: f32[8,128], index: 3, kind: output, shape index: {}]
  %s4 = sld [smem:[#allocation0]]
  $region34: #{tpu_custom_call.1} parent=0
    _
  %s6 = ssub.s32 1, %s4
  %s7 = scalar_select 0, %s6, %s4
  $region1: #{tpu_custom_call.1} parent=0
    #allocation2 [shape = 'u8[512]{0}', space=smem, size = 0x200, scoped, tag = 'input window, operand 0, single buffered']
    #allocation3 [shape = 's32[1]{0}', space=sflag, size = 0x4, scoped, tag = 'scoped memory for tpu_custom_call.1']
    #allocation4 [shape = 's32[1]{0}', space=sflag, size = 0x4, scoped, tag = 'scoped memory for tpu_custom_call.1']
    #allocation5 [shape = 's32[1]{0}', space=sflag, size = 0x4, scoped, tag = 'scoped memory for tpu_custom_call.1']
    #allocation6 [shape = 'u8[65536]{0}', space=vmem, size = 0x10000, scoped, tag = 'input window, operand 1, single buffered']
    #allocation7 [shape = 'u8[53248]{0}', space=vmem, size = 0xd000, scoped, tag = 'input window, operand 2, single buffered']
    #allocation8 [shape = 's32[1]{0}', space=sflag, size = 0x4, scoped, tag = 'scoped memory for tpu_custom_call.1']
    #allocation9 [shape = 'u8[4096]{0}', space=vmem, size = 0x1000, scoped, tag = 'output window, operand 0, single buffered']
    %8 = vsyncpa [#allocation5], 0
    %9 = vsyncpa [#allocation3], 0
    %10 = vsyncpa [#allocation8], 0
    %11 = vsyncpa [#allocation4], 0
    // Predicated region
    $region2: #{tpu_custom_call.1} parent=1 // pred_check
      _
    $region3: #{tpu_custom_call.1} parent=1 // pred_check_branch
      %13 = sbr.rel (0) target = $region5
    $region4: #{tpu_custom_call.1} parent=1 // pred_region
      %15 = vsyncadd [#allocation5], 0
      %s17 = sshll.u32 %s0, 4
      %s18 = int_to_ptr.hbm [resolvable:$true] %s17
      %20 = dma.hbm_to_smem %s18, 16, [#allocation2], [#allocation5]
    $region5: #{tpu_custom_call.1} parent=1 // pred_fallthru
      _
    // Predicated region
    $region6: #{tpu_custom_call.1} parent=1 // pred_check
      _
    $region7: #{tpu_custom_call.1} parent=1 // pred_check_branch
      %22 = sbr.rel (0) target = $region9
    $region8: #{tpu_custom_call.1} parent=1 // pred_region
      %24 = vsyncadd [#allocation3], 0
      %s25 = sshll.u32 %s1, 4
      %s26 = int_to_ptr.hbm [resolvable:$true] %s25
      %s27 = sshll.u32 [#allocation6], 4
      %s28 = int_to_ptr.vmem [resolvable:$true] %s27
      %33 = dma.hbm_to_vmem [thread:$0]  %s26, 2048, %s28, [#allocation3], 16, 16, 1
    $region9: #{tpu_custom_call.1} parent=1 // pred_fallthru
      _
    // Predicated region
    $region10: #{tpu_custom_call.1} parent=1 // pred_check
      _
    $region11: #{tpu_custom_call.1} parent=1 // pred_check_branch
      %35 = sbr.rel (0) target = $region13
    $region12: #{tpu_custom_call.1} parent=1 // pred_region
      %37 = vsyncadd [#allocation8], 0
      %s38 = sshll.u32 %s2, 4
      %s39 = int_to_ptr.hbm [resolvable:$true] %s38
      %s40 = sshll.u32 [#allocation7], 4
      %s41 = int_to_ptr.vmem [resolvable:$true] %s40
      %46 = dma.hbm_to_vmem [thread:$0]  %s39, 1664, %s41, [#allocation8], 128, 128, 8
    $region13: #{tpu_custom_call.1} parent=1 // pred_fallthru
      _
    // Predicated region
    $region14: #{tpu_custom_call.1} parent=1 // pred_check
      _
    $region15: #{tpu_custom_call.1} parent=1 // pred_check_branch
      %48 = sbr.rel (0) target = $region17
    $region16: #{tpu_custom_call.1} parent=1 // pred_region
      %50 = dma.done [#allocation5], 16
    $region17: #{tpu_custom_call.1} parent=1 // pred_fallthru
      _
    // Predicated region
    $region18: #{tpu_custom_call.1} parent=1 // pred_check
      _
    $region19: #{tpu_custom_call.1} parent=1 // pred_check_branch
      %52 = sbr.rel (0) target = $region21
    $region20: #{tpu_custom_call.1} parent=1 // pred_region
      %54 = dma.done [#allocation3], 2048
    $region21: #{tpu_custom_call.1} parent=1 // pred_fallthru
      _
    // Predicated region
    $region22: #{tpu_custom_call.1} parent=1 // pred_check
      _
    $region23: #{tpu_custom_call.1} parent=1 // pred_check_branch
      %56 = sbr.rel (0) target = $region25
    $region24: #{tpu_custom_call.1} parent=1 // pred_region
      %58 = dma.done [#allocation8], 1664
    $region25: #{tpu_custom_call.1} parent=1 // pred_fallthru
      _
    %59 = sfence
    %v60 = vld [vmem:[#allocation7] sm:$0xff]
    %v61 = vld [vmem:[#allocation7 + $0x8] sm:$0xff]
    %v62 = vld [vmem:[#allocation7 + $0x10] sm:$0xff]
    %v63 = vld [vmem:[#allocation7 + $0x18] sm:$0xff]
    %v64 = vld [vmem:[#allocation7 + $0x20] sm:$0xff]
    %v65 = vld [vmem:[#allocation7 + $0x28] sm:$0xff]
    %v66 = vld [vmem:[#allocation7 + $0x30] sm:$0xff]
    %v67 = vld [vmem:[#allocation7 + $0x38] sm:$0xff]
    %v68 = vld [vmem:[#allocation7 + $0x40] sm:$0xff]
    %v69 = vld [vmem:[#allocation7 + $0x48] sm:$0xff]
    %v70 = vld [vmem:[#allocation7 + $0x50] sm:$0xff]
    %v71 = vld [vmem:[#allocation7 + $0x58] sm:$0xff]
    %v72 = vld [vmem:[#allocation7 + $0x60] sm:$0x1]
    %v73 = vld [vmem:[#allocation7 + $0x61] sm:$0x1]
    %vm74 = vcmask 261120
    %v76 = vsel %vm74, 0.0, 0
    %78 = vmatpush.msra.mxu0 0.0
    %79 = vmatpush.msra.mxu0 0.0
    %80 = vmatpush.msra.mxu0 0.0
    %81 = vmatpush.msra.mxu0 0.0
    %82 = vmatpush.msra.mxu0 0.0
    %83 = vmatpush.msra.mxu0 0.0
    %84 = vmatpush.msra.mxu0 0.0
    %85 = vmatpush.msra.mxu0 0.0
    %86 = vmatpush.msra.mxu0 0.0
    %87 = vmatpush.msra.mxu0 0.0
    %88 = vmatpush.msra.mxu0 0.0
    %89 = vmatpush.msra.mxu0 0.0
    %90 = vmatpush.msra.mxu0 %v71
    %91 = vmatpush.msra.mxu0 %v70
    %92 = vmatpush.msra.mxu0 %v69
    %93 = vmatpush.msra.mxu0 %v68
    %94 = vmatmul.f32.gmra.mxu0 %v76
    %v95 = vpop.f32.mrf.mxu0
    %v96 = vadd.f32 0.0, %v95
    %97 = vdwg.mxu0
    %s98 = sld [smem:[#allocation2]]
    %s99 = scalar_lea.vmem [#allocation6], %s98
    %v100 = vld [vmem:[%s99] sm:$0x1]
    %v101 = vadd.f32 %v100, %v72
    %102 = vmatpush.msra.mxu0 0.0
    %103 = vmatpush.msra.mxu0 0.0
    %104 = vmatpush.msra.mxu0 0.0
    %105 = vmatpush.msra.mxu0 0.0
    %106 = vmatpush.msra.mxu0 0.0
    %107 = vmatpush.msra.mxu0 0.0
    %108 = vmatpush.msra.mxu0 0.0
    %109 = vmatpush.msra.mxu0 0.0
    %110 = vmatpush.msra.mxu0 0.0
    %111 = vmatpush.msra.mxu0 0.0
    %112 = vmatpush.msra.mxu0 0.0
    %113 = vmatpush.msra.mxu0 0.0
    %114 = vmatpush.msra.mxu0 %v63
    %115 = vmatpush.msra.mxu0 %v62
    %116 = vmatpush.msra.mxu0 %v61
    %117 = vmatpush.msra.mxu0 %v60
    %118 = vmatmul.f32.gmra.mxu0 %v76
    %v119 = vpop.f32.mrf.mxu0
    %v120 = vadd.f32 0.0, %v119
    %121 = vdwg.mxu0
    %v122 = vadd.f32 %v101, %v120
    %v123 = vxor.u32 %v122, 2147483648
    %v124 = vmul.f32 %v123, 1.442695
    %v125 = vpow.pop %v124
    %v126 = vadd.f32 %v125, 1.0
    %v127 = vrcp.pop %v126
    %v128 = vmul.f32 %v126, %v127
    %v129 = vsub.f32 1.0, %v128
    %v130 = vmul.f32 %v127, %v129
    %v131 = vadd.f32 %v127, %v130
    %vm132 = vweird.f32 %v126
    %vm133 = vweird.f32 %v127
    %vm134 = vmor %vm132, %vm133
    %v135 = vsel %vm134, %v127, %v131
    %v136 = vand.u32 2147483647, %v126
    %vm137 = vcmp.eq.f32.partialorder %v136, 8.507059e+37
    %v138 = vand.u32 %v126, 2147483648
    %v139 = vor.u32 1.1754944e-38, %v138
    %v140 = vsel %vm137, %v139, %v135
    %v141 = vmul.f32 1.0, %v140
    %v142 = vtanh.pop %v122
    %v143 = vmul.f32 %v141, 0.0
    %145 = vrot.lane.b32.xlu0 %v142, 64
    %v146 = vpop.permute.xlu0 %145
    %v148 = vmul.f32 %v141, %v146
    %150 = vrot.lane.b32.xlu0 %v148, 32
    %v151 = vpop.permute.xlu0 %150
    %v153 = vadd.f32 %v143, %v151
    %v154 = vtanh.pop %v153
    %156 = vrot.lane.b32.xlu0 %v154, 64
    %v157 = vpop.permute.xlu0 %156
    %v159 = vmul.f32 %v141, %v157
    %v161 = vperm.slane %v159, 0
    %162 = vrot.lane.b32.xlu0 %v161, 32
    %v163 = vpop.permute.xlu0 %162
    %v164 = vsel %vm74, %v163, 0
    %166 = vmatpush.msra.mxu0 0.0
    %167 = vmatpush.msra.mxu0 0.0
    %168 = vmatpush.msra.mxu0 0.0
    %169 = vmatpush.msra.mxu0 0.0
    %170 = vmatpush.msra.mxu0 0.0
    %171 = vmatpush.msra.mxu0 0.0
    %172 = vmatpush.msra.mxu0 0.0
    %173 = vmatpush.msra.mxu0 0.0
    %174 = vmatpush.msra.mxu0 0.0
    %175 = vmatpush.msra.mxu0 0.0
    %176 = vmatpush.msra.mxu0 0.0
    %177 = vmatpush.msra.mxu0 0.0
    %178 = vmatpush.msra.mxu0 %v67
    %179 = vmatpush.msra.mxu0 %v66
    %180 = vmatpush.msra.mxu0 %v65
    %181 = vmatpush.msra.mxu0 %v64
    %182 = vmatmul.f32.gmra.mxu0 %v164
    %v183 = vpop.f32.mrf.mxu0
    %v184 = vadd.f32 %v96, %v183
    %185 = vdwg.mxu0
    %v186 = vadd.f32 %v184, %v73
    %v187 = vxor.u32 %v186, 2147483648
    %v188 = vmul.f32 %v187, 1.442695
    %v189 = vpow.pop %v188
    %v190 = vadd.f32 %v189, 1.0
    %v191 = vrcp.pop %v190
    %v192 = vmul.f32 %v190, %v191
    %v193 = vsub.f32 1.0, %v192
    %v194 = vmul.f32 %v191, %v193
    %v195 = vadd.f32 %v191, %v194
    %vm196 = vweird.f32 %v190
    %vm197 = vweird.f32 %v191
    %vm198 = vmor %vm196, %vm197
    %v199 = vsel %vm198, %v191, %v195
    %v200 = vand.u32 2147483647, %v190
    %vm201 = vcmp.eq.f32.partialorder %v200, 8.507059e+37
    %v202 = vand.u32 %v190, 2147483648
    %v203 = vor.u32 1.1754944e-38, %v202
    %v204 = vsel %vm201, %v203, %v199
    %v205 = vmul.f32 1.0, %v204
    %v206 = vtanh.pop %v186
    %v207 = vmul.f32 %v205, 0.0
    %209 = vrot.lane.b32.xlu0 %v206, 64
    %v210 = vpop.permute.xlu0 %209
    %v212 = vmul.f32 %v205, %v210
    %214 = vrot.lane.b32.xlu0 %v212, 32
    %v215 = vpop.permute.xlu0 %214
    %v217 = vadd.f32 %v207, %v215
    %v218 = vtanh.pop %v217
    %220 = vrot.lane.b32.xlu0 %v218, 64
    %v221 = vpop.permute.xlu0 %220
    %v223 = vmul.f32 %v205, %v221
    %225 = vrot.lane.b32.xlu0 %v223, 32
    %v226 = vpop.permute.xlu0 %225
    %v227 = vsel %vm74, %v226, 0
    %229 = vmatpush.msra.mxu0 0.0
    %230 = vmatpush.msra.mxu0 0.0
    %231 = vmatpush.msra.mxu0 0.0
    %232 = vmatpush.msra.mxu0 0.0
    %233 = vmatpush.msra.mxu0 0.0
    %234 = vmatpush.msra.mxu0 0.0
    %235 = vmatpush.msra.mxu0 0.0
    %236 = vmatpush.msra.mxu0 0.0
    %237 = vmatpush.msra.mxu0 0.0
    %238 = vmatpush.msra.mxu0 0.0
    %239 = vmatpush.msra.mxu0 0.0
    %240 = vmatpush.msra.mxu0 0.0
    %241 = vmatpush.msra.mxu0 %v71
    %242 = vmatpush.msra.mxu0 %v70
    %243 = vmatpush.msra.mxu0 %v69
    %244 = vmatpush.msra.mxu0 %v68
    %245 = vmatmul.f32.gmra.mxu0 %v227
    %v246 = vpop.f32.mrf.mxu0
    %v247 = vadd.f32 0.0, %v246
    %248 = vdwg.mxu0
    %s249 = sld [smem:[#allocation2 + $0x1]]
    %s250 = scalar_lea.vmem [#allocation6], %s249
    %v251 = vld [vmem:[%s250] sm:$0x1]
    %v252 = vadd.f32 %v251, %v72
    %253 = vmatpush.msra.mxu0 0.0
    %254 = vmatpush.msra.mxu0 0.0
    %255 = vmatpush.msra.mxu0 0.0
    %256 = vmatpush.msra.mxu0 0.0
    %257 = vmatpush.msra.mxu0 0.0
    %258 = vmatpush.msra.mxu0 0.0
    %259 = vmatpush.msra.mxu0 0.0
    %260 = vmatpush.msra.mxu0 0.0
    %261 = vmatpush.msra.mxu0 0.0
    %262 = vmatpush.msra.mxu0 0.0
    %263 = vmatpush.msra.mxu0 0.0
    %264 = vmatpush.msra.mxu0 0.0
    %265 = vmatpush.msra.mxu0 %v63
    %266 = vmatpush.msra.mxu0 %v62
    %267 = vmatpush.msra.mxu0 %v61
    %268 = vmatpush.msra.mxu0 %v60
    %269 = vmatmul.f32.gmra.mxu0 %v164
    %v270 = vpop.f32.mrf.mxu0
    %v271 = vadd.f32 0.0, %v270
    %272 = vdwg.mxu0
    %v273 = vadd.f32 %v252, %v271
    %v274 = vxor.u32 %v273, 2147483648
    %v275 = vmul.f32 %v274, 1.442695
    %v276 = vpow.pop %v275
    %v277 = vadd.f32 %v276, 1.0
    %v278 = vrcp.pop %v277
    %v279 = vmul.f32 %v277, %v278
    %v280 = vsub.f32 1.0, %v279
    %v281 = vmul.f32 %v278, %v280
    %v282 = vadd.f32 %v278, %v281
    %vm283 = vweird.f32 %v277
    %vm284 = vweird.f32 %v278
    %vm285 = vmor %vm283, %vm284
    %v286 = vsel %vm285, %v278, %v282
    %v287 = vand.u32 2147483647, %v277
    %vm288 = vcmp.eq.f32.partialorder %v287, 8.507059e+37
    %v289 = vand.u32 %v277, 2147483648
    %v290 = vor.u32 1.1754944e-38, %v289
    %v291 = vsel %vm288, %v290, %v286
    %v292 = vmul.f32 1.0, %v291
    %v293 = vtanh.pop %v273
    %v294 = vmul.f32 %v292, %v153
    %296 = vrot.lane.b32.xlu0 %v293, 64
    %v297 = vpop.permute.xlu0 %296
    %v299 = vmul.f32 %v292, %v297
    %301 = vrot.lane.b32.xlu0 %v299, 32
    %v302 = vpop.permute.xlu0 %301
    %v304 = vadd.f32 %v294, %v302
    %v305 = vtanh.pop %v304
    %307 = vrot.lane.b32.xlu0 %v305, 64
    %v308 = vpop.permute.xlu0 %307
    %v310 = vmul.f32 %v292, %v308
    %v312 = vperm.slane %v310, 0
    %313 = vrot.lane.b32.xlu0 %v312, 32
    %v314 = vpop.permute.xlu0 %313
    %v315 = vsel %vm74, %v314, 0
    %317 = vmatpush.msra.mxu0 0.0
    %318 = vmatpush.msra.mxu0 0.0
    %319 = vmatpush.msra.mxu0 0.0
    %320 = vmatpush.msra.mxu0 0.0
    %321 = vmatpush.msra.mxu0 0.0
    %322 = vmatpush.msra.mxu0 0.0
    %323 = vmatpush.msra.mxu0 0.0
    %324 = vmatpush.msra.mxu0 0.0
    %325 = vmatpush.msra.mxu0 0.0
    %326 = vmatpush.msra.mxu0 0.0
    %327 = vmatpush.msra.mxu0 0.0
    %328 = vmatpush.msra.mxu0 0.0
    %329 = vmatpush.msra.mxu0 %v67
    %330 = vmatpush.msra.mxu0 %v66
    %331 = vmatpush.msra.mxu0 %v65
    %332 = vmatpush.msra.mxu0 %v64
    %333 = vmatmul.f32.gmra.mxu0 %v315
    %v334 = vpop.f32.mrf.mxu0
    %v335 = vadd.f32 %v247, %v334
    %336 = vdwg.mxu0
    %v337 = vadd.f32 %v335, %v73
    %v338 = vxor.u32 %v337, 2147483648
    %v339 = vmul.f32 %v338, 1.442695
    %v340 = vpow.pop %v339
    %v341 = vadd.f32 %v340, 1.0
    %v342 = vrcp.pop %v341
    %v343 = vmul.f32 %v341, %v342
    %v344 = vsub.f32 1.0, %v343
    %v345 = vmul.f32 %v342, %v344
    %v346 = vadd.f32 %v342, %v345
    %vm347 = vweird.f32 %v341
    %vm348 = vweird.f32 %v342
    %vm349 = vmor %vm347, %vm348
    %v350 = vsel %vm349, %v342, %v346
    %v351 = vand.u32 2147483647, %v341
    %vm352 = vcmp.eq.f32.partialorder %v351, 8.507059e+37
    %v353 = vand.u32 %v341, 2147483648
    %v354 = vor.u32 1.1754944e-38, %v353
    %v355 = vsel %vm352, %v354, %v350
    %v356 = vmul.f32 1.0, %v355
    %v357 = vtanh.pop %v337
    %v358 = vmul.f32 %v356, %v217
    %360 = vrot.lane.b32.xlu0 %v357, 64
    %v361 = vpop.permute.xlu0 %360
    %v363 = vmul.f32 %v356, %v361
    %365 = vrot.lane.b32.xlu0 %v363, 32
    %v366 = vpop.permute.xlu0 %365
    %v368 = vadd.f32 %v358, %v366
    %v369 = vtanh.pop %v368
    %371 = vrot.lane.b32.xlu0 %v369, 64
    %v372 = vpop.permute.xlu0 %371
    %v374 = vmul.f32 %v356, %v372
    %376 = vrot.lane.b32.xlu0 %v374, 32
    %v377 = vpop.permute.xlu0 %376
    %v378 = vsel %vm74, %v377, 0
    %380 = vmatpush.msra.mxu0 0.0
    %381 = vmatpush.msra.mxu0 0.0
    %382 = vmatpush.msra.mxu0 0.0
    %383 = vmatpush.msra.mxu0 0.0
    %384 = vmatpush.msra.mxu0 0.0
    %385 = vmatpush.msra.mxu0 0.0
    %386 = vmatpush.msra.mxu0 0.0
    %387 = vmatpush.msra.mxu0 0.0
    %388 = vmatpush.msra.mxu0 0.0
    %389 = vmatpush.msra.mxu0 0.0
    %390 = vmatpush.msra.mxu0 0.0
    %391 = vmatpush.msra.mxu0 0.0
    %392 = vmatpush.msra.mxu0 %v71
    %393 = vmatpush.msra.mxu0 %v70
    %394 = vmatpush.msra.mxu0 %v69
    %395 = vmatpush.msra.mxu0 %v68
    %396 = vmatmul.f32.gmra.mxu0 %v378
    %v397 = vpop.f32.mrf.mxu0
    %v398 = vadd.f32 0.0, %v397
    %399 = vdwg.mxu0
    %s400 = sld [smem:[#allocation2 + $0x2]]
    %s401 = scalar_lea.vmem [#allocation6], %s400
    %v402 = vld [vmem:[%s401] sm:$0x1]
    %v403 = vadd.f32 %v402, %v72
    %404 = vmatpush.msra.mxu0 0.0
    %405 = vmatpush.msra.mxu0 0.0
    %406 = vmatpush.msra.mxu0 0.0
    %407 = vmatpush.msra.mxu0 0.0
    %408 = vmatpush.msra.mxu0 0.0
    %409 = vmatpush.msra.mxu0 0.0
    %410 = vmatpush.msra.mxu0 0.0
    %411 = vmatpush.msra.mxu0 0.0
    %412 = vmatpush.msra.mxu0 0.0
    %413 = vmatpush.msra.mxu0 0.0
    %414 = vmatpush.msra.mxu0 0.0
    %415 = vmatpush.msra.mxu0 0.0
    %416 = vmatpush.msra.mxu0 %v63
    %417 = vmatpush.msra.mxu0 %v62
    %418 = vmatpush.msra.mxu0 %v61
    %419 = vmatpush.msra.mxu0 %v60
    %420 = vmatmul.f32.gmra.mxu0 %v315
    %v421 = vpop.f32.mrf.mxu0
    %v422 = vadd.f32 0.0, %v421
    %423 = vdwg.mxu0
    %v424 = vadd.f32 %v403, %v422
    %v425 = vxor.u32 %v424, 2147483648
    %v426 = vmul.f32 %v425, 1.442695
    %v427 = vpow.pop %v426
    %v428 = vadd.f32 %v427, 1.0
    %v429 = vrcp.pop %v428
    %v430 = vmul.f32 %v428, %v429
    %v431 = vsub.f32 1.0, %v430
    %v432 = vmul.f32 %v429, %v431
    %v433 = vadd.f32 %v429, %v432
    %vm434 = vweird.f32 %v428
    %vm435 = vweird.f32 %v429
    %vm436 = vmor %vm434, %vm435
    %v437 = vsel %vm436, %v429, %v433
    %v438 = vand.u32 2147483647, %v428
    %vm439 = vcmp.eq.f32.partialorder %v438, 8.507059e+37
    %v440 = vand.u32 %v428, 2147483648
    %v441 = vor.u32 1.1754944e-38, %v440
    %v442 = vsel %vm439, %v441, %v437
    %v443 = vmul.f32 1.0, %v442
    %v444 = vtanh.pop %v424
    %v445 = vmul.f32 %v443, %v304
    %447 = vrot.lane.b32.xlu0 %v444, 64
    %v448 = vpop.permute.xlu0 %447
    %v450 = vmul.f32 %v443, %v448
    %452 = vrot.lane.b32.xlu0 %v450, 32
    %v453 = vpop.permute.xlu0 %452
    %v455 = vadd.f32 %v445, %v453
    %v456 = vtanh.pop %v455
    %458 = vrot.lane.b32.xlu0 %v456, 64
    %v459 = vpop.permute.xlu0 %458
    %v461 = vmul.f32 %v443, %v459
    %v463 = vperm.slane %v461, 0
    %464 = vrot.lane.b32.xlu0 %v463, 32
    %v465 = vpop.permute.xlu0 %464
    %v466 = vsel %vm74, %v465, 0
    %468 = vmatpush.msra.mxu0 0.0
    %469 = vmatpush.msra.mxu0 0.0
    %470 = vmatpush.msra.mxu0 0.0
    %471 = vmatpush.msra.mxu0 0.0
    %472 = vmatpush.msra.mxu0 0.0
    %473 = vmatpush.msra.mxu0 0.0
    %474 = vmatpush.msra.mxu0 0.0
    %475 = vmatpush.msra.mxu0 0.0
    %476 = vmatpush.msra.mxu0 0.0
    %477 = vmatpush.msra.mxu0 0.0
    %478 = vmatpush.msra.mxu0 0.0
    %479 = vmatpush.msra.mxu0 0.0
    %480 = vmatpush.msra.mxu0 %v67
    %481 = vmatpush.msra.mxu0 %v66
    %482 = vmatpush.msra.mxu0 %v65
    %483 = vmatpush.msra.mxu0 %v64
    %484 = vmatmul.f32.gmra.mxu0 %v466
    %v485 = vpop.f32.mrf.mxu0
    %v486 = vadd.f32 %v398, %v485
    %487 = vdwg.mxu0
    %v488 = vadd.f32 %v486, %v73
    %v489 = vxor.u32 %v488, 2147483648
    %v490 = vmul.f32 %v489, 1.442695
    %v491 = vpow.pop %v490
    %v492 = vadd.f32 %v491, 1.0
    %v493 = vrcp.pop %v492
    %v494 = vmul.f32 %v492, %v493
    %v495 = vsub.f32 1.0, %v494
    %v496 = vmul.f32 %v493, %v495
    %v497 = vadd.f32 %v493, %v496
    %vm498 = vweird.f32 %v492
    %vm499 = vweird.f32 %v493
    %vm500 = vmor %vm498, %vm499
    %v501 = vsel %vm500, %v493, %v497
    %v502 = vand.u32 2147483647, %v492
    %vm503 = vcmp.eq.f32.partialorder %v502, 8.507059e+37
    %v504 = vand.u32 %v492, 2147483648
    %v505 = vor.u32 1.1754944e-38, %v504
    %v506 = vsel %vm503, %v505, %v501
    %v507 = vmul.f32 1.0, %v506
    %v508 = vtanh.pop %v488
    %v509 = vmul.f32 %v507, %v368
    %511 = vrot.lane.b32.xlu0 %v508, 64
    %v512 = vpop.permute.xlu0 %511
    %v514 = vmul.f32 %v507, %v512
    %516 = vrot.lane.b32.xlu0 %v514, 32
    %v517 = vpop.permute.xlu0 %516
    %v519 = vadd.f32 %v509, %v517
    %v520 = vtanh.pop %v519
    %522 = vrot.lane.b32.xlu0 %v520, 64
    %v523 = vpop.permute.xlu0 %522
    %v525 = vmul.f32 %v507, %v523
    %527 = vrot.lane.b32.xlu0 %v525, 32
    %v528 = vpop.permute.xlu0 %527
    %v529 = vsel %vm74, %v528, 0
    %531 = vmatpush.msra.mxu0 0.0
    %532 = vmatpush.msra.mxu0 0.0
    %533 = vmatpush.msra.mxu0 0.0
    %534 = vmatpush.msra.mxu0 0.0
    %535 = vmatpush.msra.mxu0 0.0
    %536 = vmatpush.msra.mxu0 0.0
    %537 = vmatpush.msra.mxu0 0.0
    %538 = vmatpush.msra.mxu0 0.0
    %539 = vmatpush.msra.mxu0 0.0
    %540 = vmatpush.msra.mxu0 0.0
    %541 = vmatpush.msra.mxu0 0.0
    %542 = vmatpush.msra.mxu0 0.0
    %543 = vmatpush.msra.mxu0 %v71
    %544 = vmatpush.msra.mxu0 %v70
    %545 = vmatpush.msra.mxu0 %v69
    %546 = vmatpush.msra.mxu0 %v68
    %547 = vmatmul.f32.gmra.mxu0 %v529
    %v548 = vpop.f32.mrf.mxu0
    %v549 = vadd.f32 0.0, %v548
    %550 = vdwg.mxu0
    %s551 = sld [smem:[#allocation2 + $0x3]]
    %s552 = scalar_lea.vmem [#allocation6], %s551
    %v553 = vld [vmem:[%s552] sm:$0x1]
    %v554 = vadd.f32 %v553, %v72
    %555 = vmatpush.msra.mxu0 0.0
    %556 = vmatpush.msra.mxu0 0.0
    %557 = vmatpush.msra.mxu0 0.0
    %558 = vmatpush.msra.mxu0 0.0
    %559 = vmatpush.msra.mxu0 0.0
    %560 = vmatpush.msra.mxu0 0.0
    %561 = vmatpush.msra.mxu0 0.0
    %562 = vmatpush.msra.mxu0 0.0
    %563 = vmatpush.msra.mxu0 0.0
    %564 = vmatpush.msra.mxu0 0.0
    %565 = vmatpush.msra.mxu0 0.0
    %566 = vmatpush.msra.mxu0 0.0
    %567 = vmatpush.msra.mxu0 %v63
    %568 = vmatpush.msra.mxu0 %v62
    %569 = vmatpush.msra.mxu0 %v61
    %570 = vmatpush.msra.mxu0 %v60
    %571 = vmatmul.f32.gmra.mxu0 %v466
    %v572 = vpop.f32.mrf.mxu0
    %v573 = vadd.f32 0.0, %v572
    %574 = vdwg.mxu0
    %v575 = vadd.f32 %v554, %v573
    %v576 = vxor.u32 %v575, 2147483648
    %v577 = vmul.f32 %v576, 1.442695
    %v578 = vpow.pop %v577
    %v579 = vadd.f32 %v578, 1.0
    %v580 = vrcp.pop %v579
    %v581 = vmul.f32 %v579, %v580
    %v582 = vsub.f32 1.0, %v581
    %v583 = vmul.f32 %v580, %v582
    %v584 = vadd.f32 %v580, %v583
    %vm585 = vweird.f32 %v579
    %vm586 = vweird.f32 %v580
    %vm587 = vmor %vm585, %vm586
    %v588 = vsel %vm587, %v580, %v584
    %v589 = vand.u32 2147483647, %v579
    %vm590 = vcmp.eq.f32.partialorder %v589, 8.507059e+37
    %v591 = vand.u32 %v579, 2147483648
    %v592 = vor.u32 1.1754944e-38, %v591
    %v593 = vsel %vm590, %v592, %v588
    %v594 = vmul.f32 1.0, %v593
    %v595 = vtanh.pop %v575
    %v596 = vmul.f32 %v594, %v455
    %598 = vrot.lane.b32.xlu0 %v595, 64
    %v599 = vpop.permute.xlu0 %598
    %v601 = vmul.f32 %v594, %v599
    %603 = vrot.lane.b32.xlu0 %v601, 32
    %v604 = vpop.permute.xlu0 %603
    %v606 = vadd.f32 %v596, %v604
    %v607 = vtanh.pop %v606
    %609 = vrot.lane.b32.xlu0 %v607, 64
    %v610 = vpop.permute.xlu0 %609
    %v612 = vmul.f32 %v594, %v610
    %v614 = vperm.slane %v612, 0
    %615 = vrot.lane.b32.xlu0 %v614, 32
    %v616 = vpop.permute.xlu0 %615
    %v617 = vsel %vm74, %v616, 0
    %619 = vmatpush.msra.mxu0 0.0
    %620 = vmatpush.msra.mxu0 0.0
    %621 = vmatpush.msra.mxu0 0.0
    %622 = vmatpush.msra.mxu0 0.0
    %623 = vmatpush.msra.mxu0 0.0
    %624 = vmatpush.msra.mxu0 0.0
    %625 = vmatpush.msra.mxu0 0.0
    %626 = vmatpush.msra.mxu0 0.0
    %627 = vmatpush.msra.mxu0 0.0
    %628 = vmatpush.msra.mxu0 0.0
    %629 = vmatpush.msra.mxu0 0.0
    %630 = vmatpush.msra.mxu0 0.0
    %631 = vmatpush.msra.mxu0 %v67
    %632 = vmatpush.msra.mxu0 %v66
    %633 = vmatpush.msra.mxu0 %v65
    %634 = vmatpush.msra.mxu0 %v64
    %635 = vmatmul.f32.gmra.mxu0 %v617
    %v636 = vpop.f32.mrf.mxu0
    %v637 = vadd.f32 %v549, %v636
    %638 = vdwg.mxu0
    %v639 = vadd.f32 %v637, %v73
    %v640 = vxor.u32 %v639, 2147483648
    %v641 = vmul.f32 %v640, 1.442695
    %v642 = vpow.pop %v641
    %v643 = vadd.f32 %v642, 1.0
    %v644 = vrcp.pop %v643
    %v645 = vmul.f32 %v643, %v644
    %v646 = vsub.f32 1.0, %v645
    %v647 = vmul.f32 %v644, %v646
    %v648 = vadd.f32 %v644, %v647
    %vm649 = vweird.f32 %v643
    %vm650 = vweird.f32 %v644
    %vm651 = vmor %vm649, %vm650
    %v652 = vsel %vm651, %v644, %v648
    %v653 = vand.u32 2147483647, %v643
    %vm654 = vcmp.eq.f32.partialorder %v653, 8.507059e+37
    %v655 = vand.u32 %v643, 2147483648
    %v656 = vor.u32 1.1754944e-38, %v655
    %v657 = vsel %vm654, %v656, %v652
    %v658 = vmul.f32 1.0, %v657
    %v659 = vtanh.pop %v639
    %v660 = vmul.f32 %v658, %v519
    %662 = vrot.lane.b32.xlu0 %v659, 64
    %v663 = vpop.permute.xlu0 %662
    %v665 = vmul.f32 %v658, %v663
    %667 = vrot.lane.b32.xlu0 %v665, 32
    %v668 = vpop.permute.xlu0 %667
    %v670 = vadd.f32 %v660, %v668
    %v671 = vtanh.pop %v670
    %673 = vrot.lane.b32.xlu0 %v671, 64
    %v674 = vpop.permute.xlu0 %673
    %v676 = vmul.f32 %v658, %v674
    %678 = vrot.lane.b32.xlu0 %v676, 32
    %v679 = vpop.permute.xlu0 %678
    %v680 = vsel %vm74, %v679, 0
    %682 = vmatpush.msra.mxu0 0.0
    %683 = vmatpush.msra.mxu0 0.0
    %684 = vmatpush.msra.mxu0 0.0
    %685 = vmatpush.msra.mxu0 0.0
    %686 = vmatpush.msra.mxu0 0.0
    %687 = vmatpush.msra.mxu0 0.0
    %688 = vmatpush.msra.mxu0 0.0
    %689 = vmatpush.msra.mxu0 0.0
    %690 = vmatpush.msra.mxu0 0.0
    %691 = vmatpush.msra.mxu0 0.0
    %692 = vmatpush.msra.mxu0 0.0
    %693 = vmatpush.msra.mxu0 0.0
    %694 = vmatpush.msra.mxu0 %v71
    %695 = vmatpush.msra.mxu0 %v70
    %696 = vmatpush.msra.mxu0 %v69
    %697 = vmatpush.msra.mxu0 %v68
    %698 = vmatmul.f32.gmra.mxu0 %v680
    %v699 = vpop.f32.mrf.mxu0
    %v700 = vadd.f32 0.0, %v699
    %701 = vdwg.mxu0
    %s702 = sld [smem:[#allocation2 + $0x4]]
    %s703 = scalar_lea.vmem [#allocation6], %s702
    %v704 = vld [vmem:[%s703] sm:$0x1]
    %v705 = vadd.f32 %v704, %v72
    %706 = vmatpush.msra.mxu0 0.0
    %707 = vmatpush.msra.mxu0 0.0
    %708 = vmatpush.msra.mxu0 0.0
    %709 = vmatpush.msra.mxu0 0.0
    %710 = vmatpush.msra.mxu0 0.0
    %711 = vmatpush.msra.mxu0 0.0
    %712 = vmatpush.msra.mxu0 0.0
    %713 = vmatpush.msra.mxu0 0.0
    %714 = vmatpush.msra.mxu0 0.0
    %715 = vmatpush.msra.mxu0 0.0
    %716 = vmatpush.msra.mxu0 0.0
    %717 = vmatpush.msra.mxu0 0.0
    %718 = vmatpush.msra.mxu0 %v63
    %719 = vmatpush.msra.mxu0 %v62
    %720 = vmatpush.msra.mxu0 %v61
    %721 = vmatpush.msra.mxu0 %v60
    %722 = vmatmul.f32.gmra.mxu0 %v617
    %v723 = vpop.f32.mrf.mxu0
    %v724 = vadd.f32 0.0, %v723
    %725 = vdwg.mxu0
    %v726 = vadd.f32 %v705, %v724
    %v727 = vxor.u32 %v726, 2147483648
    %v728 = vmul.f32 %v727, 1.442695
    %v729 = vpow.pop %v728
    %v730 = vadd.f32 %v729, 1.0
    %v731 = vrcp.pop %v730
    %v732 = vmul.f32 %v730, %v731
    %v733 = vsub.f32 1.0, %v732
    %v734 = vmul.f32 %v731, %v733
    %v735 = vadd.f32 %v731, %v734
    %vm736 = vweird.f32 %v730
    %vm737 = vweird.f32 %v731
    %vm738 = vmor %vm736, %vm737
    %v739 = vsel %vm738, %v731, %v735
    %v740 = vand.u32 2147483647, %v730
    %vm741 = vcmp.eq.f32.partialorder %v740, 8.507059e+37
    %v742 = vand.u32 %v730, 2147483648
    %v743 = vor.u32 1.1754944e-38, %v742
    %v744 = vsel %vm741, %v743, %v739
    %v745 = vmul.f32 1.0, %v744
    %v746 = vtanh.pop %v726
    %v747 = vmul.f32 %v745, %v606
    %749 = vrot.lane.b32.xlu0 %v746, 64
    %v750 = vpop.permute.xlu0 %749
    %v752 = vmul.f32 %v745, %v750
    %754 = vrot.lane.b32.xlu0 %v752, 32
    %v755 = vpop.permute.xlu0 %754
    %v757 = vadd.f32 %v747, %v755
    %v758 = vtanh.pop %v757
    %760 = vrot.lane.b32.xlu0 %v758, 64
    %v761 = vpop.permute.xlu0 %760
    %v763 = vmul.f32 %v745, %v761
    %v765 = vperm.slane %v763, 0
    %766 = vrot.lane.b32.xlu0 %v765, 32
    %v767 = vpop.permute.xlu0 %766
    %v768 = vsel %vm74, %v767, 0
    %770 = vmatpush.msra.mxu0 0.0
    %771 = vmatpush.msra.mxu0 0.0
    %772 = vmatpush.msra.mxu0 0.0
    %773 = vmatpush.msra.mxu0 0.0
    %774 = vmatpush.msra.mxu0 0.0
    %775 = vmatpush.msra.mxu0 0.0
    %776 = vmatpush.msra.mxu0 0.0
    %777 = vmatpush.msra.mxu0 0.0
    %778 = vmatpush.msra.mxu0 0.0
    %779 = vmatpush.msra.mxu0 0.0
    %780 = vmatpush.msra.mxu0 0.0
    %781 = vmatpush.msra.mxu0 0.0
    %782 = vmatpush.msra.mxu0 %v67
    %783 = vmatpush.msra.mxu0 %v66
    %784 = vmatpush.msra.mxu0 %v65
    %785 = vmatpush.msra.mxu0 %v64
    %786 = vmatmul.f32.gmra.mxu0 %v768
    %v787 = vpop.f32.mrf.mxu0
    %v788 = vadd.f32 %v700, %v787
    %789 = vdwg.mxu0
    %v790 = vadd.f32 %v788, %v73
    %v791 = vxor.u32 %v790, 2147483648
    %v792 = vmul.f32 %v791, 1.442695
    %v793 = vpow.pop %v792
    %v794 = vadd.f32 %v793, 1.0
    %v795 = vrcp.pop %v794
    %v796 = vmul.f32 %v794, %v795
    %v797 = vsub.f32 1.0, %v796
    %v798 = vmul.f32 %v795, %v797
    %v799 = vadd.f32 %v795, %v798
    %vm800 = vweird.f32 %v794
    %vm801 = vweird.f32 %v795
    %vm802 = vmor %vm800, %vm801
    %v803 = vsel %vm802, %v795, %v799
    %v804 = vand.u32 2147483647, %v794
    %vm805 = vcmp.eq.f32.partialorder %v804, 8.507059e+37
    %v806 = vand.u32 %v794, 2147483648
    %v807 = vor.u32 1.1754944e-38, %v806
    %v808 = vsel %vm805, %v807, %v803
    %v809 = vmul.f32 1.0, %v808
    %v810 = vtanh.pop %v790
    %v811 = vmul.f32 %v809, %v670
    %813 = vrot.lane.b32.xlu0 %v810, 64
    %v814 = vpop.permute.xlu0 %813
    %v816 = vmul.f32 %v809, %v814
    %818 = vrot.lane.b32.xlu0 %v816, 32
    %v819 = vpop.permute.xlu0 %818
    %v821 = vadd.f32 %v811, %v819
    %v822 = vtanh.pop %v821
    %824 = vrot.lane.b32.xlu0 %v822, 64
    %v825 = vpop.permute.xlu0 %824
    %v827 = vmul.f32 %v809, %v825
    %829 = vrot.lane.b32.xlu0 %v827, 32
    %v830 = vpop.permute.xlu0 %829
    %v831 = vsel %vm74, %v830, 0
    %833 = vmatpush.msra.mxu0 0.0
    %834 = vmatpush.msra.mxu0 0.0
    %835 = vmatpush.msra.mxu0 0.0
    %836 = vmatpush.msra.mxu0 0.0
    %837 = vmatpush.msra.mxu0 0.0
    %838 = vmatpush.msra.mxu0 0.0
    %839 = vmatpush.msra.mxu0 0.0
    %840 = vmatpush.msra.mxu0 0.0
    %841 = vmatpush.msra.mxu0 0.0
    %842 = vmatpush.msra.mxu0 0.0
    %843 = vmatpush.msra.mxu0 0.0
    %844 = vmatpush.msra.mxu0 0.0
    %845 = vmatpush.msra.mxu0 %v71
    %846 = vmatpush.msra.mxu0 %v70
    %847 = vmatpush.msra.mxu0 %v69
    %848 = vmatpush.msra.mxu0 %v68
    %849 = vmatmul.f32.gmra.mxu0 %v831
    %v850 = vpop.f32.mrf.mxu0
    %v851 = vadd.f32 0.0, %v850
    %852 = vdwg.mxu0
    %s853 = sld [smem:[#allocation2 + $0x5]]
    %s854 = scalar_lea.vmem [#allocation6], %s853
    %v855 = vld [vmem:[%s854] sm:$0x1]
    %v856 = vadd.f32 %v855, %v72
    %857 = vmatpush.msra.mxu0 0.0
    %858 = vmatpush.msra.mxu0 0.0
    %859 = vmatpush.msra.mxu0 0.0
    %860 = vmatpush.msra.mxu0 0.0
    %861 = vmatpush.msra.mxu0 0.0
    %862 = vmatpush.msra.mxu0 0.0
    %863 = vmatpush.msra.mxu0 0.0
    %864 = vmatpush.msra.mxu0 0.0
    %865 = vmatpush.msra.mxu0 0.0
    %866 = vmatpush.msra.mxu0 0.0
    %867 = vmatpush.msra.mxu0 0.0
    %868 = vmatpush.msra.mxu0 0.0
    %869 = vmatpush.msra.mxu0 %v63
    %870 = vmatpush.msra.mxu0 %v62
    %871 = vmatpush.msra.mxu0 %v61
    %872 = vmatpush.msra.mxu0 %v60
    %873 = vmatmul.f32.gmra.mxu0 %v768
    %v874 = vpop.f32.mrf.mxu0
    %v875 = vadd.f32 0.0, %v874
    %876 = vdwg.mxu0
    %v877 = vadd.f32 %v856, %v875
    %v878 = vxor.u32 %v877, 2147483648
    %v879 = vmul.f32 %v878, 1.442695
    %v880 = vpow.pop %v879
    %v881 = vadd.f32 %v880, 1.0
    %v882 = vrcp.pop %v881
    %v883 = vmul.f32 %v881, %v882
    %v884 = vsub.f32 1.0, %v883
    %v885 = vmul.f32 %v882, %v884
    %v886 = vadd.f32 %v882, %v885
    %vm887 = vweird.f32 %v881
    %vm888 = vweird.f32 %v882
    %vm889 = vmor %vm887, %vm888
    %v890 = vsel %vm889, %v882, %v886
    %v891 = vand.u32 2147483647, %v881
    %vm892 = vcmp.eq.f32.partialorder %v891, 8.507059e+37
    %v893 = vand.u32 %v881, 2147483648
    %v894 = vor.u32 1.1754944e-38, %v893
    %v895 = vsel %vm892, %v894, %v890
    %v896 = vmul.f32 1.0, %v895
    %v897 = vtanh.pop %v877
    %v898 = vmul.f32 %v896, %v757
    %900 = vrot.lane.b32.xlu0 %v897, 64
    %v901 = vpop.permute.xlu0 %900
    %v903 = vmul.f32 %v896, %v901
    %905 = vrot.lane.b32.xlu0 %v903, 32
    %v906 = vpop.permute.xlu0 %905
    %v908 = vadd.f32 %v898, %v906
    %v909 = vtanh.pop %v908
    %911 = vrot.lane.b32.xlu0 %v909, 64
    %v912 = vpop.permute.xlu0 %911
    %v914 = vmul.f32 %v896, %v912
    %v916 = vperm.slane %v914, 0
    %917 = vrot.lane.b32.xlu0 %v916, 32
    %v918 = vpop.permute.xlu0 %917
    %v919 = vsel %vm74, %v918, 0
    %921 = vmatpush.msra.mxu0 0.0
    %922 = vmatpush.msra.mxu0 0.0
    %923 = vmatpush.msra.mxu0 0.0
    %924 = vmatpush.msra.mxu0 0.0
    %925 = vmatpush.msra.mxu0 0.0
    %926 = vmatpush.msra.mxu0 0.0
    %927 = vmatpush.msra.mxu0 0.0
    %928 = vmatpush.msra.mxu0 0.0
    %929 = vmatpush.msra.mxu0 0.0
    %930 = vmatpush.msra.mxu0 0.0
    %931 = vmatpush.msra.mxu0 0.0
    %932 = vmatpush.msra.mxu0 0.0
    %933 = vmatpush.msra.mxu0 %v67
    %934 = vmatpush.msra.mxu0 %v66
    %935 = vmatpush.msra.mxu0 %v65
    %936 = vmatpush.msra.mxu0 %v64
    %937 = vmatmul.f32.gmra.mxu0 %v919
    %v938 = vpop.f32.mrf.mxu0
    %v939 = vadd.f32 %v851, %v938
    %940 = vdwg.mxu0
    %v941 = vadd.f32 %v939, %v73
    %v942 = vxor.u32 %v941, 2147483648
    %v943 = vmul.f32 %v942, 1.442695
    %v944 = vpow.pop %v943
    %v945 = vadd.f32 %v944, 1.0
    %v946 = vrcp.pop %v945
    %v947 = vmul.f32 %v945, %v946
    %v948 = vsub.f32 1.0, %v947
    %v949 = vmul.f32 %v946, %v948
    %v950 = vadd.f32 %v946, %v949
    %vm951 = vweird.f32 %v945
    %vm952 = vweird.f32 %v946
    %vm953 = vmor %vm951, %vm952
    %v954 = vsel %vm953, %v946, %v950
    %v955 = vand.u32 2147483647, %v945
    %vm956 = vcmp.eq.f32.partialorder %v955, 8.507059e+37
    %v957 = vand.u32 %v945, 2147483648
    %v958 = vor.u32 1.1754944e-38, %v957
    %v959 = vsel %vm956, %v958, %v954
    %v960 = vmul.f32 1.0, %v959
    %v961 = vtanh.pop %v941
    %v962 = vmul.f32 %v960, %v821
    %964 = vrot.lane.b32.xlu0 %v961, 64
    %v965 = vpop.permute.xlu0 %964
    %v967 = vmul.f32 %v960, %v965
    %969 = vrot.lane.b32.xlu0 %v967, 32
    %v970 = vpop.permute.xlu0 %969
    %v972 = vadd.f32 %v962, %v970
    %v973 = vtanh.pop %v972
    %975 = vrot.lane.b32.xlu0 %v973, 64
    %v976 = vpop.permute.xlu0 %975
    %v978 = vmul.f32 %v960, %v976
    %980 = vrot.lane.b32.xlu0 %v978, 32
    %v981 = vpop.permute.xlu0 %980
    %v982 = vsel %vm74, %v981, 0
    %984 = vmatpush.msra.mxu0 0.0
    %985 = vmatpush.msra.mxu0 0.0
    %986 = vmatpush.msra.mxu0 0.0
    %987 = vmatpush.msra.mxu0 0.0
    %988 = vmatpush.msra.mxu0 0.0
    %989 = vmatpush.msra.mxu0 0.0
    %990 = vmatpush.msra.mxu0 0.0
    %991 = vmatpush.msra.mxu0 0.0
    %992 = vmatpush.msra.mxu0 0.0
    %993 = vmatpush.msra.mxu0 0.0
    %994 = vmatpush.msra.mxu0 0.0
    %995 = vmatpush.msra.mxu0 0.0
    %996 = vmatpush.msra.mxu0 %v71
    %997 = vmatpush.msra.mxu0 %v70
    %998 = vmatpush.msra.mxu0 %v69
    %999 = vmatpush.msra.mxu0 %v68
    %1000 = vmatmul.f32.gmra.mxu0 %v982
    %v1001 = vpop.f32.mrf.mxu0
    %v1002 = vadd.f32 0.0, %v1001
    %1003 = vdwg.mxu0
    %s1004 = sld [smem:[#allocation2 + $0x6]]
    %s1005 = scalar_lea.vmem [#allocation6], %s1004
    %v1006 = vld [vmem:[%s1005] sm:$0x1]
    %v1007 = vadd.f32 %v1006, %v72
    %1008 = vmatpush.msra.mxu0 0.0
    %1009 = vmatpush.msra.mxu0 0.0
    %1010 = vmatpush.msra.mxu0 0.0
    %1011 = vmatpush.msra.mxu0 0.0
    %1012 = vmatpush.msra.mxu0 0.0
    %1013 = vmatpush.msra.mxu0 0.0
    %1014 = vmatpush.msra.mxu0 0.0
    %1015 = vmatpush.msra.mxu0 0.0
    %1016 = vmatpush.msra.mxu0 0.0
    %1017 = vmatpush.msra.mxu0 0.0
    %1018 = vmatpush.msra.mxu0 0.0
    %1019 = vmatpush.msra.mxu0 0.0
    %1020 = vmatpush.msra.mxu0 %v63
    %1021 = vmatpush.msra.mxu0 %v62
    %1022 = vmatpush.msra.mxu0 %v61
    %1023 = vmatpush.msra.mxu0 %v60
    %1024 = vmatmul.f32.gmra.mxu0 %v919
    %v1025 = vpop.f32.mrf.mxu0
    %v1026 = vadd.f32 0.0, %v1025
    %1027 = vdwg.mxu0
    %v1028 = vadd.f32 %v1007, %v1026
    %v1029 = vxor.u32 %v1028, 2147483648
    %v1030 = vmul.f32 %v1029, 1.442695
    %v1031 = vpow.pop %v1030
    %v1032 = vadd.f32 %v1031, 1.0
    %v1033 = vrcp.pop %v1032
    %v1034 = vmul.f32 %v1032, %v1033
    %v1035 = vsub.f32 1.0, %v1034
    %v1036 = vmul.f32 %v1033, %v1035
    %v1037 = vadd.f32 %v1033, %v1036
    %vm1038 = vweird.f32 %v1032
    %vm1039 = vweird.f32 %v1033
    %vm1040 = vmor %vm1038, %vm1039
    %v1041 = vsel %vm1040, %v1033, %v1037
    %v1042 = vand.u32 2147483647, %v1032
    %vm1043 = vcmp.eq.f32.partialorder %v1042, 8.507059e+37
    %v1044 = vand.u32 %v1032, 2147483648
    %v1045 = vor.u32 1.1754944e-38, %v1044
    %v1046 = vsel %vm1043, %v1045, %v1041
    %v1047 = vmul.f32 1.0, %v1046
    %v1048 = vtanh.pop %v1028
    %v1049 = vmul.f32 %v1047, %v908
    %1051 = vrot.lane.b32.xlu0 %v1048, 64
    %v1052 = vpop.permute.xlu0 %1051
    %v1054 = vmul.f32 %v1047, %v1052
    %1056 = vrot.lane.b32.xlu0 %v1054, 32
    %v1057 = vpop.permute.xlu0 %1056
    %v1059 = vadd.f32 %v1049, %v1057
    %v1060 = vtanh.pop %v1059
    %1062 = vrot.lane.b32.xlu0 %v1060, 64
    %v1063 = vpop.permute.xlu0 %1062
    %v1065 = vmul.f32 %v1047, %v1063
    %v1067 = vperm.slane %v1065, 0
    %1068 = vrot.lane.b32.xlu0 %v1067, 32
    %v1069 = vpop.permute.xlu0 %1068
    %v1070 = vsel %vm74, %v1069, 0
    %1072 = vmatpush.msra.mxu0 0.0
    %1073 = vmatpush.msra.mxu0 0.0
    %1074 = vmatpush.msra.mxu0 0.0
    %1075 = vmatpush.msra.mxu0 0.0
    %1076 = vmatpush.msra.mxu0 0.0
    %1077 = vmatpush.msra.mxu0 0.0
    %1078 = vmatpush.msra.mxu0 0.0
    %1079 = vmatpush.msra.mxu0 0.0
    %1080 = vmatpush.msra.mxu0 0.0
    %1081 = vmatpush.msra.mxu0 0.0
    %1082 = vmatpush.msra.mxu0 0.0
    %1083 = vmatpush.msra.mxu0 0.0
    %1084 = vmatpush.msra.mxu0 %v67
    %1085 = vmatpush.msra.mxu0 %v66
    %1086 = vmatpush.msra.mxu0 %v65
    %1087 = vmatpush.msra.mxu0 %v64
    %1088 = vmatmul.f32.gmra.mxu0 %v1070
    %v1089 = vpop.f32.mrf.mxu0
    %v1090 = vadd.f32 %v1002, %v1089
    %1091 = vdwg.mxu0
    %v1092 = vadd.f32 %v1090, %v73
    %v1093 = vxor.u32 %v1092, 2147483648
    %v1094 = vmul.f32 %v1093, 1.442695
    %v1095 = vpow.pop %v1094
    %v1096 = vadd.f32 %v1095, 1.0
    %v1097 = vrcp.pop %v1096
    %v1098 = vmul.f32 %v1096, %v1097
    %v1099 = vsub.f32 1.0, %v1098
    %v1100 = vmul.f32 %v1097, %v1099
    %v1101 = vadd.f32 %v1097, %v1100
    %vm1102 = vweird.f32 %v1096
    %vm1103 = vweird.f32 %v1097
    %vm1104 = vmor %vm1102, %vm1103
    %v1105 = vsel %vm1104, %v1097, %v1101
    %v1106 = vand.u32 2147483647, %v1096
    %vm1107 = vcmp.eq.f32.partialorder %v1106, 8.507059e+37
    %v1108 = vand.u32 %v1096, 2147483648
    %v1109 = vor.u32 1.1754944e-38, %v1108
    %v1110 = vsel %vm1107, %v1109, %v1105
    %v1111 = vmul.f32 1.0, %v1110
    %v1112 = vtanh.pop %v1092
    %v1113 = vmul.f32 %v1111, %v972
    %1115 = vrot.lane.b32.xlu0 %v1112, 64
    %v1116 = vpop.permute.xlu0 %1115
    %v1118 = vmul.f32 %v1111, %v1116
    %1120 = vrot.lane.b32.xlu0 %v1118, 32
    %v1121 = vpop.permute.xlu0 %1120
    %v1123 = vadd.f32 %v1113, %v1121
    %v1124 = vtanh.pop %v1123
    %1126 = vrot.lane.b32.xlu0 %v1124, 64
    %v1127 = vpop.permute.xlu0 %1126
    %v1129 = vmul.f32 %v1111, %v1127
    %1131 = vrot.lane.b32.xlu0 %v1129, 32
    %v1132 = vpop.permute.xlu0 %1131
    %v1133 = vsel %vm74, %v1132, 0
    %1135 = vmatpush.msra.mxu0 0.0
    %1136 = vmatpush.msra.mxu0 0.0
    %1137 = vmatpush.msra.mxu0 0.0
    %1138 = vmatpush.msra.mxu0 0.0
    %1139 = vmatpush.msra.mxu0 0.0
    %1140 = vmatpush.msra.mxu0 0.0
    %1141 = vmatpush.msra.mxu0 0.0
    %1142 = vmatpush.msra.mxu0 0.0
    %1143 = vmatpush.msra.mxu0 0.0
    %1144 = vmatpush.msra.mxu0 0.0
    %1145 = vmatpush.msra.mxu0 0.0
    %1146 = vmatpush.msra.mxu0 0.0
    %1147 = vmatpush.msra.mxu0 %v71
    %1148 = vmatpush.msra.mxu0 %v70
    %1149 = vmatpush.msra.mxu0 %v69
    %1150 = vmatpush.msra.mxu0 %v68
    %1151 = vmatmul.f32.gmra.mxu0 %v1133
    %v1152 = vpop.f32.mrf.mxu0
    %v1153 = vadd.f32 0.0, %v1152
    %1154 = vdwg.mxu0
    %s1155 = sld [smem:[#allocation2 + $0x7]]
    %s1156 = scalar_lea.vmem [#allocation6], %s1155
    %v1157 = vld [vmem:[%s1156] sm:$0x1]
    %v1158 = vadd.f32 %v1157, %v72
    %1159 = vmatpush.msra.mxu0 0.0
    %1160 = vmatpush.msra.mxu0 0.0
    %1161 = vmatpush.msra.mxu0 0.0
    %1162 = vmatpush.msra.mxu0 0.0
    %1163 = vmatpush.msra.mxu0 0.0
    %1164 = vmatpush.msra.mxu0 0.0
    %1165 = vmatpush.msra.mxu0 0.0
    %1166 = vmatpush.msra.mxu0 0.0
    %1167 = vmatpush.msra.mxu0 0.0
    %1168 = vmatpush.msra.mxu0 0.0
    %1169 = vmatpush.msra.mxu0 0.0
    %1170 = vmatpush.msra.mxu0 0.0
    %1171 = vmatpush.msra.mxu0 %v63
    %1172 = vmatpush.msra.mxu0 %v62
    %1173 = vmatpush.msra.mxu0 %v61
    %1174 = vmatpush.msra.mxu0 %v60
    %1175 = vmatmul.f32.gmra.mxu0 %v1070
    %v1176 = vpop.f32.mrf.mxu0
    %v1177 = vadd.f32 0.0, %v1176
    %1178 = vdwg.mxu0
    %v1179 = vadd.f32 %v1158, %v1177
    %v1180 = vxor.u32 %v1179, 2147483648
    %v1181 = vmul.f32 %v1180, 1.442695
    %v1182 = vpow.pop %v1181
    %v1183 = vadd.f32 %v1182, 1.0
    %v1184 = vrcp.pop %v1183
    %v1185 = vmul.f32 %v1183, %v1184
    %v1186 = vsub.f32 1.0, %v1185
    %v1187 = vmul.f32 %v1184, %v1186
    %v1188 = vadd.f32 %v1184, %v1187
    %vm1189 = vweird.f32 %v1183
    %vm1190 = vweird.f32 %v1184
    %vm1191 = vmor %vm1189, %vm1190
    %v1192 = vsel %vm1191, %v1184, %v1188
    %v1193 = vand.u32 2147483647, %v1183
    %vm1194 = vcmp.eq.f32.partialorder %v1193, 8.507059e+37
    %v1195 = vand.u32 %v1183, 2147483648
    %v1196 = vor.u32 1.1754944e-38, %v1195
    %v1197 = vsel %vm1194, %v1196, %v1192
    %v1198 = vmul.f32 1.0, %v1197
    %v1199 = vtanh.pop %v1179
    %v1200 = vmul.f32 %v1198, %v1059
    %1202 = vrot.lane.b32.xlu0 %v1199, 64
    %v1203 = vpop.permute.xlu0 %1202
    %v1205 = vmul.f32 %v1198, %v1203
    %1207 = vrot.lane.b32.xlu0 %v1205, 32
    %v1208 = vpop.permute.xlu0 %1207
    %v1210 = vadd.f32 %v1200, %v1208
    %v1211 = vtanh.pop %v1210
    %1213 = vrot.lane.b32.xlu0 %v1211, 64
    %v1214 = vpop.permute.xlu0 %1213
    %v1216 = vmul.f32 %v1198, %v1214
    %v1218 = vperm.slane %v1216, 0
    %1219 = vrot.lane.b32.xlu0 %v1218, 32
    %v1220 = vpop.permute.xlu0 %1219
    %v1221 = vsel %vm74, %v1220, 0
    %1223 = vmatpush.msra.mxu0 0.0
    %1224 = vmatpush.msra.mxu0 0.0
    %1225 = vmatpush.msra.mxu0 0.0
    %1226 = vmatpush.msra.mxu0 0.0
    %1227 = vmatpush.msra.mxu0 0.0
    %1228 = vmatpush.msra.mxu0 0.0
    %1229 = vmatpush.msra.mxu0 0.0
    %1230 = vmatpush.msra.mxu0 0.0
    %1231 = vmatpush.msra.mxu0 0.0
    %1232 = vmatpush.msra.mxu0 0.0
    %1233 = vmatpush.msra.mxu0 0.0
    %1234 = vmatpush.msra.mxu0 0.0
    %1235 = vmatpush.msra.mxu0 %v67
    %1236 = vmatpush.msra.mxu0 %v66
    %1237 = vmatpush.msra.mxu0 %v65
    %1238 = vmatpush.msra.mxu0 %v64
    %1239 = vmatmul.f32.gmra.mxu0 %v1221
    %v1240 = vpop.f32.mrf.mxu0
    %v1241 = vadd.f32 %v1153, %v1240
    %1242 = vdwg.mxu0
    %v1243 = vadd.f32 %v1241, %v73
    %v1244 = vxor.u32 %v1243, 2147483648
    %v1245 = vmul.f32 %v1244, 1.442695
    %v1246 = vpow.pop %v1245
    %v1247 = vadd.f32 %v1246, 1.0
    %v1248 = vrcp.pop %v1247
    %v1249 = vmul.f32 %v1247, %v1248
    %v1250 = vsub.f32 1.0, %v1249
    %v1251 = vmul.f32 %v1248, %v1250
    %v1252 = vadd.f32 %v1248, %v1251
    %vm1253 = vweird.f32 %v1247
    %vm1254 = vweird.f32 %v1248
    %vm1255 = vmor %vm1253, %vm1254
    %v1256 = vsel %vm1255, %v1248, %v1252
    %v1257 = vand.u32 2147483647, %v1247
    %vm1258 = vcmp.eq.f32.partialorder %v1257, 8.507059e+37
    %v1259 = vand.u32 %v1247, 2147483648
    %v1260 = vor.u32 1.1754944e-38, %v1259
    %v1261 = vsel %vm1258, %v1260, %v1256
    %v1262 = vmul.f32 1.0, %v1261
    %v1263 = vtanh.pop %v1243
    %v1264 = vmul.f32 %v1262, %v1123
    %1266 = vrot.lane.b32.xlu0 %v1263, 64
    %v1267 = vpop.permute.xlu0 %1266
    %v1269 = vmul.f32 %v1262, %v1267
    %1271 = vrot.lane.b32.xlu0 %v1269, 32
    %v1272 = vpop.permute.xlu0 %1271
    %v1274 = vadd.f32 %v1264, %v1272
    %v1275 = vtanh.pop %v1274
    %1277 = vrot.lane.b32.xlu0 %v1275, 64
    %v1278 = vpop.permute.xlu0 %1277
    %v1280 = vmul.f32 %v1262, %v1278
    %v1281 = vld [vmem:[#allocation7 + $0x62] sm:$0x1]
    %v1282 = vld [vmem:[#allocation7 + $0x63] sm:$0x1]
    %1284 = vrot.lane.b32.xlu0 %v1281, 96
    %v1285 = vpop.permute.xlu0 %1284
    %v1287 = vmul.f32 %v1280, %v1285
    %1289 = vrot.lane.b32.xlu0 %v1287, 32
    %v1290 = vpop.permute.xlu0 %1289
    %vm1292 = vcmask 253952
    %v1293 = vsel %vm1292, %v1290, 0.0
    %1294 = vadd.xlane.f32.xlu0 %v1293
    %v1295 = vpop.xlane.xlu0 %1294
    %v1296 = vadd.f32 %v1295, %v1282
    %v1297 = vxor.u32 %v1296, 2147483648
    %v1298 = vmul.f32 %v1297, 1.442695
    %v1299 = vpow.pop %v1298
    %v1300 = vadd.f32 %v1299, 1.0
    %v1301 = vrcp.pop %v1300
    %v1302 = vmul.f32 %v1300, %v1301
    %v1303 = vsub.f32 1.0, %v1302
    %v1304 = vmul.f32 %v1301, %v1303
    %v1305 = vadd.f32 %v1301, %v1304
    %vm1306 = vweird.f32 %v1300
    %vm1307 = vweird.f32 %v1301
    %vm1308 = vmor %vm1306, %vm1307
    %v1309 = vsel %vm1308, %v1301, %v1305
    %v1310 = vand.u32 2147483647, %v1300
    %vm1311 = vcmp.eq.f32.partialorder %v1310, 8.507059e+37
    %v1312 = vand.u32 %v1300, 2147483648
    %v1313 = vor.u32 1.1754944e-38, %v1312
    %v1314 = vsel %vm1311, %v1313, %v1309
    %v1315 = vmul.f32 1.0, %v1314
    %v1317 = vrot.slane %v1280, 7
    %v1320 = vperm.slane %v1210, 0
    %1321 = vrot.lane.b32.xlu0 %v1320, 64
    %v1322 = vpop.permute.xlu0 %1321
    %v1325 = vrot.slane %v1274, 5
    %1326 = vrot.lane.b32.xlu0 %v1325, 64
    %v1327 = vpop.permute.xlu0 %1326
    %vm1329 = vcmask 1040384
    %v1330 = vsel %vm1329, %v1216, %v1317
    %vm1331 = vcmask 1041408
    %v1332 = vsel %vm1331, %v1330, %v1322
    %vm1333 = vcmask 1042432
    %v1334 = vsel %vm1333, %v1332, %v1327
    %1336 = vrot.lane.b32.xlu0 %v1334, 32
    %v1337 = vpop.permute.xlu0 %1336
    %v1339 = vsel %vm74, %v1337, 0.0
    %1341 = vset.pattern.permute.xlu0 0
    %1342 = vperm.xlu0 %1341, %v1315
    %v1343 = vpop.permute.xlu0 %1342
    %v1346 = vrot.slane %v1339, 7
    %v1348 = vsel %vm1329, %v1343, %v1346
    %vm1349 = vcmask 1044480
    %v1350 = vsel %vm1349, %v1348, 0.0
    %1351 = vst [vmem:[#allocation9] sm:$0xff] %v1350
    // Predicated region
    $region26: #{tpu_custom_call.1} parent=1 // pred_check
      _
    $region27: #{tpu_custom_call.1} parent=1 // pred_check_branch
      %1353 = sbr.rel (0) target = $region29
    $region28: #{tpu_custom_call.1} parent=1 // pred_region
      %1355 = vsyncadd [#allocation4], 0
      %s1357 = sshll.u32 [#allocation9], 4
      %s1358 = int_to_ptr.vmem [resolvable:$true] %s1357
      %s1359 = sshll.u32 %s3, 4
      %s1360 = int_to_ptr.hbm [resolvable:$true] %s1359
      %1362 = dma.vmem_to_hbm [thread:$0]  %s1358, 128, %s1360, [#allocation4]
    $region29: #{tpu_custom_call.1} parent=1 // pred_fallthru
      _
    // Predicated region
    $region30: #{tpu_custom_call.1} parent=1 // pred_check
      _
    $region31: #{tpu_custom_call.1} parent=1 // pred_check_branch
      %1364 = sbr.rel (0) target = $region33
    $region32: #{tpu_custom_call.1} parent=1 // pred_region
      %1366 = dma.done [#allocation4], 128
    $region33: #{tpu_custom_call.1} parent=1 // pred_fallthru
      _
    %1367 = vsyncpa [#allocation3], 1
    %1368 = vsyncpa [#allocation8], 1
    %1369 = vsyncpa [#allocation4], 1
    %1370 = vsyncpa [#allocation5], 1

</llo_original>
